<compile_context>
chip_gen: v7x
topology: tpu7x:2x2x1
jax: 0.10.0
libtpu: 0.0.40
codegen_flags: <defaults>
</compile_context>

<pallas_src>
import jax
import jax.numpy as jnp
from jax.experimental import pallas as pl
from jax.experimental.pallas import tpu as pltpu


def _mine_init_kernel(x_ref, pos_ref, wt_ref, b_ref, out_ref):
    B, F, D = x_ref.shape
    H = wt_ref.shape[1]

    # embeddings = x + position_embeddings (f32 add; pos broadcasts over batch).
    emb = x_ref[...] + pos_ref[...]
    # Leading-dim merge is a free re-view: last dim unchanged, F % 8 == 0 so no
    # (8,128) tile boundary is crossed.
    emb2d = emb.reshape(B * F, D)

    # MXU matmul: bf16 x bf16 operands, f32 accumulation.  Weight arrives bf16
    # straight from HBM (do NOT widen it in the VPU); the activation is cast to
    # bf16 once, which is cheap relative to the DMA this saves.
    h = jnp.dot(emb2d.astype(wt_ref.dtype), wt_ref[...],
                preferred_element_type=jnp.float32)
    h = h + b_ref[...]                 # (1, H) f32 bias broadcast
    h = jnp.maximum(h, 0.0)            # ReLU

    # TODO(synk): nn.Dropout(0.25) is identity in inference mode; training-mode
    # stochastic dropout (pltpu.prng_seed / prng_random_bits) is not implemented.

    out_ref[...] = h.reshape(B, F, H).astype(out_ref.dtype)


def prepare_mine_init_params(w, b):
    """One-time conversion of PyTorch Linear params.

    w : [512, 1024] (PyTorch [out, in] layout), b : [512]
    Returns (wt, b_f32) with wt : [1024, 512] in bf16 (pre-transposed so no
    per-call transpose op, bf16 so the dominant weight DMA is halved).
    """
    wt = jnp.asarray(w).T.astype(jnp.bfloat16)
    return wt, jnp.asarray(b, dtype=jnp.float32)


def mine_init_forward(x, position_embeddings, wt, b):
    """Forward pass of Mine_init (if_end2end=False, eval mode).

    x                   : [B, fixdim, 1024]
    position_embeddings : [1, fixdim, 1024]
    wt                  : [1024, 512]  bf16, from prepare_mine_init_params
    b                   : [512]        f32
    returns hidden_states_stem : [B, fixdim, 512]
    """
    B, F, D = x.shape
    D_w, H = wt.shape
    assert D == D_w, "input feature dim must match weight"
    assert position_embeddings.shape == (1, F, D)
    # Keep the in-kernel reshapes as free re-views of the (8,128) tiling.
    assert F % 8 == 0, "fixdim must be a multiple of 8"
    assert D % 128 == 0 and H % 128 == 0

    b2d = b.reshape(1, H).astype(jnp.float32)

    out_bytes = B * F * H * x.dtype.itemsize
    cost = pl.CostEstimate(
        flops=2 * B * F * D * H,
        transcendentals=0,
        bytes_accessed=int(x.size * x.dtype.itemsize
                           + position_embeddings.size * position_embeddings.dtype.itemsize
                           + wt.size * wt.dtype.itemsize
                           + b2d.size * b2d.dtype.itemsize
                           + out_bytes),
    )

    rows = B * F
    if rows >= 512 and B > 1:
        # Batch-gridded path: weight/pos/bias get constant index_maps so they
        # stay resident in VMEM across grid steps; batch axis is "parallel" so
        # v7x shards it across both TensorCores.  Aim for >=256 rows per step
        # (MXU-friendly on v6e/v7x, multiple of 128 for v5e).
        bt = max(1, 256 // F) if F < 256 else 1
        while B % bt != 0:          # fall back to a divisor of B
            bt -= 1
        grid = (B // bt,)
        # Note (v5e): per-step VMEM here is ~a few MiB (double-buffered x/out
        # tiles + resident 1 MiB bf16 weight), well under the 16 MiB scoped
        # default, so no vmem_limit_bytes override is needed.
        return pl.pallas_call(
            _mine_init_kernel,
            out_shape=jax.ShapeDtypeStruct((B, F, H), x.dtype),
            grid=grid,
            in_specs=[
                pl.BlockSpec((bt, F, D), lambda i: (i, 0, 0)),
                pl.BlockSpec((1, F, D), lambda i: (0, 0, 0)),
                pl.BlockSpec((D, H), lambda i: (0, 0)),      # weight resident
                pl.BlockSpec((1, H), lambda i: (0, 0)),
            ],
            out_specs=pl.BlockSpec((bt, F, H), lambda i: (i, 0, 0)),
            compiler_params=pltpu.CompilerParams(
                dimension_semantics=("parallel",)),
            cost_estimate=cost,
        )(x, position_embeddings, wt, b2d)

    # Gridless path for small problems: everything (~2.6 MiB) is a single full
    # VMEM block; no grid-step overhead, fully fused add+matmul+bias+ReLU with
    # a lane-dense 512-wide output.
    vmem = pl.BlockSpec(memory_space=pltpu.MemorySpace.VMEM)
    return pl.pallas_call(
        _mine_init_kernel,
        out_shape=jax.ShapeDtypeStruct((B, F, H), x.dtype),
        in_specs=[vmem, vmem, vmem, vmem],
        out_specs=vmem,
        cost_estimate=cost,
    )(x, position_embeddings, wt, b2d)


def _reference(x, pos, w, b):
    emb = x + pos
    h = jnp.einsum("bfd,hd->bfh", emb, w) + b
    return jnp.maximum(h, 0.0)


if __name__ == "__main__":
    # Small shapes consistent with the module: Linear(1024 -> 512) is fixed by
    # the module; batch=2, fixdim=32.
    B, fixdim, D_in, D_out = 2, 32, 1024, 512

    key = jax.random.PRNGKey(0)
    kx, kp, kw, kb = jax.random.split(key, 4)

    x = jax.random.normal(kx, (B, fixdim, D_in), dtype=jnp.float32)
    # position_embeddings is initialized to zeros in the module; use small
    # random values here so the add path is actually exercised.
    pos = jax.random.normal(kp, (1, fixdim, D_in), dtype=jnp.float32) * 0.02
    w = jax.random.normal(kw, (D_out, D_in), dtype=jnp.float32) * 0.02
    b = jax.random.normal(kb, (D_out,), dtype=jnp.float32) * 0.02

    # One-time parameter prep (transpose + bf16 cast happen here, not per call).
    wt_bf16, b_f32 = prepare_mine_init_params(w, b)

    # Gridless small-shape path.
    out = mine_init_forward(x, pos, wt_bf16, b_f32)
    out = jax.block_until_ready(out)
    ref = _reference(x, pos, w, b)
    assert out.shape == (B, fixdim, D_out)
    # bf16 weight path -> loosened tolerance vs. the f32 reference.
    assert jnp.allclose(out, ref, atol=2e-2, rtol=2e-2)

    # Also exercise the batch-gridded (weight-resident, parallel) path once.
    B_big = 16
    x_big = jax.random.normal(kx, (B_big, fixdim, D_in), dtype=jnp.float32)
    out_big = jax.block_until_ready(mine_init_forward(x_big, pos, wt_bf16, b_f32))
    ref_big = _reference(x_big, pos, w, b)
    assert out_big.shape == (B_big, fixdim, D_out)
    assert jnp.allclose(out_big, ref_big, atol=2e-2, rtol=2e-2)

    print("KERNEL_OK")
</pallas_src>

<mosaic_0001>
module attributes {stable_mosaic.version = 11 : i64} {
  func.func @_mine_init_kernel(%arg0: memref<2x32x1024xf32, #tpu.memory_space<vmem>>, %arg1: memref<1x32x1024xf32, #tpu.memory_space<vmem>>, %arg2: memref<1024x512xbf16, #tpu.memory_space<vmem>>, %arg3: memref<1x512xf32, #tpu.memory_space<vmem>>, %arg4: memref<2x32x512xf32, #tpu.memory_space<vmem>>) attributes {dimension_semantics = [], scalar_prefetch = 0 : i64, scratch_operands = 0 : i64, tpu.core_type = #tpu.core_type<tc>} {
    %c0 = arith.constant 0 : index
    %c0_0 = arith.constant 0 : index
    %c0_1 = arith.constant 0 : index
    %0 = vector.load %arg0[%c0, %c0_0, %c0_1] : memref<2x32x1024xf32, #tpu.memory_space<vmem>>, vector<2x32x1024xf32>
    %c0_2 = arith.constant 0 : index
    %c0_3 = arith.constant 0 : index
    %c0_4 = arith.constant 0 : index
    %1 = vector.load %arg1[%c0_2, %c0_3, %c0_4] : memref<1x32x1024xf32, #tpu.memory_space<vmem>>, vector<1x32x1024xf32>
    %2 = vector.broadcast %1 : vector<1x32x1024xf32> to vector<2x32x1024xf32>
    %3 = arith.addf %0, %2 : vector<2x32x1024xf32>
    %4 = vector.shape_cast %3 : vector<2x32x1024xf32> to vector<64x1024xf32>
    %5 = arith.truncf %4 : vector<64x1024xf32> to vector<64x1024xbf16>
    %c0_5 = arith.constant 0 : index
    %c0_6 = arith.constant 0 : index
    %6 = vector.load %arg2[%c0_5, %c0_6] : memref<1024x512xbf16, #tpu.memory_space<vmem>>, vector<1024x512xbf16>
    %cst = arith.constant dense<0.000000e+00> : vector<64x512xf32>
    %7 = tpu.matmul %5, %6, %cst {dimension_numbers = #tpu.dot_dimension_numbers<[1], [0], [0], [1], [0, 0, 1, 1], [], []>} : vector<64x1024xbf16>, vector<1024x512xbf16>, vector<64x512xf32> -> vector<64x512xf32>
    %c0_7 = arith.constant 0 : index
    %c0_8 = arith.constant 0 : index
    %8 = vector.load %arg3[%c0_7, %c0_8] : memref<1x512xf32, #tpu.memory_space<vmem>>, vector<1x512xf32>
    %9 = vector.broadcast %8 : vector<1x512xf32> to vector<64x512xf32>
    %10 = arith.addf %7, %9 : vector<64x512xf32>
    %cst_9 = arith.constant 0.000000e+00 : f32
    %11 = vector.broadcast %cst_9 : f32 to vector<64x512xf32>
    %12 = arith.maximumf %10, %11 : vector<64x512xf32>
    %13 = vector.shape_cast %12 : vector<64x512xf32> to vector<2x32x512xf32>
    %c0_10 = arith.constant 0 : index
    %c0_11 = arith.constant 0 : index
    %c0_12 = arith.constant 0 : index
    %14 = vector.load %arg4[%c0_10, %c0_11, %c0_12] : memref<2x32x512xf32, #tpu.memory_space<vmem>>, vector<2x32x512xf32>
    tpu.vector_store %arg4[%c0_10, %c0_11, %c0_12], %13 {strides = array<i32>} : memref<2x32x512xf32, #tpu.memory_space<vmem>>, vector<2x32x512xf32>,
    return
  }
}

</mosaic_0001>

<llo_original>
// kernel: tpu_custom_call.1
$region0: #{tpu_custom_call.1}
  #allocation0 [shape = 'u32[]', space=smem, size = 0x4, offset = 0x4, fixed_abs, tag = 'smem constant byte address 0x4 - core index']
  #allocation1 [shape = 'u32[144,128]{1,0:T(1,128)}', space=vmem, size = 0x12000, scoped, tag = 'internal scratch']
  %s0 = inlined_call_operand.hbm [shape: f32[2,32,1024], index: 0, kind: input, shape index: {}]
  %s1 = inlined_call_operand.hbm [shape: f32[1,32,1024], index: 1, kind: input, shape index: {}]
  %s2 = inlined_call_operand.hbm [shape: bf16[1024,512], index: 2, kind: input, shape index: {}]
  %s3 = inlined_call_operand.vmem [shape: f32[1,512], index: 3, kind: input, shape index: {}]
  %s4 = inlined_call_operand.hbm [shape: f32[2,32,512], index: 4, kind: output, shape index: {}]
  %s5 = sld [smem:[#allocation0]]
  $region38: #{tpu_custom_call.1} parent=0
    _
  %s7 = ssub.s32 1, %s5
  %s8 = scalar_select 0, %s7, %s5
  $region1: #{tpu_custom_call.1} parent=0
    #allocation2 [shape = 'u8[262144]{0}', space=vmem, size = 0x40000, scoped, tag = 'input window, operand 0, single buffered']
    #allocation3 [shape = 's32[1]{0}', space=sflag, size = 0x4, scoped, tag = 'scoped memory for tpu_custom_call.1']
    #allocation4 [shape = 's32[1]{0}', space=sflag, size = 0x4, scoped, tag = 'scoped memory for tpu_custom_call.1']
    #allocation5 [shape = 'u8[131072]{0}', space=vmem, size = 0x20000, scoped, tag = 'input window, operand 1, single buffered']
    #allocation6 [shape = 's32[1]{0}', space=sflag, size = 0x4, scoped, tag = 'scoped memory for tpu_custom_call.1']
    #allocation7 [shape = 'u8[1048576]{0}', space=vmem, size = 0x100000, scoped, tag = 'input window, operand 2, single buffered']
    #allocation8 [shape = 'u8[131072]{0}', space=vmem, size = 0x20000, scoped, tag = 'output window, operand 0, single buffered']
    %9 = vsyncpa [#allocation3], 0
    %10 = vsyncpa [#allocation6], 0
    %11 = vsyncpa [#allocation4], 0
    // Predicated region
    $region2: #{tpu_custom_call.1} parent=1 // pred_check
      _
    $region3: #{tpu_custom_call.1} parent=1 // pred_check_branch
      %13 = sbr.rel (0) target = $region5
    $region4: #{tpu_custom_call.1} parent=1 // pred_region
      %s15 = ssub.s32 8192, 8192
      %16 = vsyncadd [#allocation3], %s15
      %s17 = sshll.u32 [#allocation2], 4
      %s18 = int_to_ptr.vmem [resolvable:$true] %s17
      %23 = dma.hbm_to_vmem [thread:$0]  %s0, 8192, %s18, [#allocation3], 1024, 1024, 64
    $region5: #{tpu_custom_call.1} parent=1 // pred_fallthru
      _
    // Predicated region
    $region6: #{tpu_custom_call.1} parent=1 // pred_check
      _
    $region7: #{tpu_custom_call.1} parent=1 // pred_check_branch
      %25 = sbr.rel (0) target = $region9
    $region8: #{tpu_custom_call.1} parent=1 // pred_region
      %s27 = ssub.s32 4096, 4096
      %28 = vsyncadd [#allocation6], %s27
      %s29 = sshll.u32 [#allocation5], 4
      %s30 = int_to_ptr.vmem [resolvable:$true] %s29
      %35 = dma.hbm_to_vmem [thread:$0]  %s1, 4096, %s30, [#allocation6], 1024, 1024, 64
    $region9: #{tpu_custom_call.1} parent=1 // pred_fallthru
      _
    // Predicated region
    $region10: #{tpu_custom_call.1} parent=1 // pred_check
      _
    $region11: #{tpu_custom_call.1} parent=1 // pred_check_branch
      %37 = sbr.rel (0) target = $region13
    $region12: #{tpu_custom_call.1} parent=1 // pred_region
      %s39 = ssub.s32 32768, 32768
      %40 = vsyncadd [#allocation6], %s39
      %s41 = sshll.u32 [#allocation7], 4
      %s42 = int_to_ptr.vmem [resolvable:$true] %s41
      %47 = dma.hbm_to_vmem [thread:$0]  %s2, 32768, %s42, [#allocation6], 256, 256, 16
    $region13: #{tpu_custom_call.1} parent=1 // pred_fallthru
      _
    // Predicated region
    $region14: #{tpu_custom_call.1} parent=1 // pred_check
      _
    $region15: #{tpu_custom_call.1} parent=1 // pred_check_branch
      %49 = sbr.rel (0) target = $region17
    $region16: #{tpu_custom_call.1} parent=1 // pred_region
      _
    $region17: #{tpu_custom_call.1} parent=1 // pred_fallthru
      _
    // Predicated region
    $region18: #{tpu_custom_call.1} parent=1 // pred_check
      _
    $region19: #{tpu_custom_call.1} parent=1 // pred_check_branch
      %51 = sbr.rel (0) target = $region21
    $region20: #{tpu_custom_call.1} parent=1 // pred_region
      %52 = dma.done [#allocation3], 8192
    $region21: #{tpu_custom_call.1} parent=1 // pred_fallthru
      _
    // Predicated region
    $region22: #{tpu_custom_call.1} parent=1 // pred_check
      _
    $region23: #{tpu_custom_call.1} parent=1 // pred_check_branch
      %54 = sbr.rel (0) target = $region25
    $region24: #{tpu_custom_call.1} parent=1 // pred_region
      %55 = dma.done [#allocation6], 4096
    $region25: #{tpu_custom_call.1} parent=1 // pred_fallthru
      _
    // Predicated region
    $region26: #{tpu_custom_call.1} parent=1 // pred_check
      _
    $region27: #{tpu_custom_call.1} parent=1 // pred_check_branch
      %57 = sbr.rel (0) target = $region29
    $region28: #{tpu_custom_call.1} parent=1 // pred_region
      %58 = dma.done [#allocation6], 32768
    $region29: #{tpu_custom_call.1} parent=1 // pred_fallthru
      _
    %v59 = vld [vmem:[#allocation2] sm:$0xff]
    %v60 = vld [vmem:[#allocation2 + $0x8] sm:$0xff]
    %v61 = vld [vmem:[#allocation2 + $0x10] sm:$0xff]
    %v62 = vld [vmem:[#allocation2 + $0x18] sm:$0xff]
    %v63 = vld [vmem:[#allocation2 + $0x20] sm:$0xff]
    %v64 = vld [vmem:[#allocation2 + $0x28] sm:$0xff]
    %v65 = vld [vmem:[#allocation2 + $0x30] sm:$0xff]
    %v66 = vld [vmem:[#allocation2 + $0x38] sm:$0xff]
    %v67 = vld [vmem:[#allocation2 + $0x40] sm:$0xff]
    %v68 = vld [vmem:[#allocation2 + $0x48] sm:$0xff]
    %v69 = vld [vmem:[#allocation2 + $0x50] sm:$0xff]
    %v70 = vld [vmem:[#allocation2 + $0x58] sm:$0xff]
    %v71 = vld [vmem:[#allocation2 + $0x60] sm:$0xff]
    %v72 = vld [vmem:[#allocation2 + $0x68] sm:$0xff]
    %v73 = vld [vmem:[#allocation2 + $0x70] sm:$0xff]
    %v74 = vld [vmem:[#allocation2 + $0x78] sm:$0xff]
    %v75 = vld [vmem:[#allocation2 + $0x80] sm:$0xff]
    %v76 = vld [vmem:[#allocation2 + $0x88] sm:$0xff]
    %v77 = vld [vmem:[#allocation2 + $0x90] sm:$0xff]
    %v78 = vld [vmem:[#allocation2 + $0x98] sm:$0xff]
    %v79 = vld [vmem:[#allocation2 + $0xa0] sm:$0xff]
    %v80 = vld [vmem:[#allocation2 + $0xa8] sm:$0xff]
    %v81 = vld [vmem:[#allocation2 + $0xb0] sm:$0xff]
    %v82 = vld [vmem:[#allocation2 + $0xb8] sm:$0xff]
    %v83 = vld [vmem:[#allocation2 + $0xc0] sm:$0xff]
    %v84 = vld [vmem:[#allocation2 + $0xc8] sm:$0xff]
    %v85 = vld [vmem:[#allocation2 + $0xd0] sm:$0xff]
    %v86 = vld [vmem:[#allocation2 + $0xd8] sm:$0xff]
    %v87 = vld [vmem:[#allocation2 + $0xe0] sm:$0xff]
    %v88 = vld [vmem:[#allocation2 + $0xe8] sm:$0xff]
    %v89 = vld [vmem:[#allocation2 + $0xf0] sm:$0xff]
    %v90 = vld [vmem:[#allocation2 + $0xf8] sm:$0xff]
    %v91 = vld [vmem:[#allocation2 + $0x100] sm:$0xff]
    %v92 = vld [vmem:[#allocation2 + $0x108] sm:$0xff]
    %v93 = vld [vmem:[#allocation2 + $0x110] sm:$0xff]
    %v94 = vld [vmem:[#allocation2 + $0x118] sm:$0xff]
    %v95 = vld [vmem:[#allocation2 + $0x120] sm:$0xff]
    %v96 = vld [vmem:[#allocation2 + $0x128] sm:$0xff]
    %v97 = vld [vmem:[#allocation2 + $0x130] sm:$0xff]
    %v98 = vld [vmem:[#allocation2 + $0x138] sm:$0xff]
    %v99 = vld [vmem:[#allocation2 + $0x140] sm:$0xff]
    %v100 = vld [vmem:[#allocation2 + $0x148] sm:$0xff]
    %v101 = vld [vmem:[#allocation2 + $0x150] sm:$0xff]
    %v102 = vld [vmem:[#allocation2 + $0x158] sm:$0xff]
    %v103 = vld [vmem:[#allocation2 + $0x160] sm:$0xff]
    %v104 = vld [vmem:[#allocation2 + $0x168] sm:$0xff]
    %v105 = vld [vmem:[#allocation2 + $0x170] sm:$0xff]
    %v106 = vld [vmem:[#allocation2 + $0x178] sm:$0xff]
    %v107 = vld [vmem:[#allocation2 + $0x180] sm:$0xff]
    %v108 = vld [vmem:[#allocation2 + $0x188] sm:$0xff]
    %v109 = vld [vmem:[#allocation2 + $0x190] sm:$0xff]
    %v110 = vld [vmem:[#allocation2 + $0x198] sm:$0xff]
    %v111 = vld [vmem:[#allocation2 + $0x1a0] sm:$0xff]
    %v112 = vld [vmem:[#allocation2 + $0x1a8] sm:$0xff]
    %v113 = vld [vmem:[#allocation2 + $0x1b0] sm:$0xff]
    %v114 = vld [vmem:[#allocation2 + $0x1b8] sm:$0xff]
    %v115 = vld [vmem:[#allocation2 + $0x1c0] sm:$0xff]
    %v116 = vld [vmem:[#allocation2 + $0x1c8] sm:$0xff]
    %v117 = vld [vmem:[#allocation2 + $0x1d0] sm:$0xff]
    %v118 = vld [vmem:[#allocation2 + $0x1d8] sm:$0xff]
    %v119 = vld [vmem:[#allocation2 + $0x1e0] sm:$0xff]
    %v120 = vld [vmem:[#allocation2 + $0x1e8] sm:$0xff]
    %v121 = vld [vmem:[#allocation2 + $0x1f0] sm:$0xff]
    %v122 = vld [vmem:[#allocation2 + $0x1f8] sm:$0xff]
    %v123 = vld [vmem:[#allocation5] sm:$0xff]
    %v124 = vld [vmem:[#allocation5 + $0x8] sm:$0xff]
    %v125 = vld [vmem:[#allocation5 + $0x10] sm:$0xff]
    %v126 = vld [vmem:[#allocation5 + $0x18] sm:$0xff]
    %v127 = vld [vmem:[#allocation5 + $0x20] sm:$0xff]
    %v128 = vld [vmem:[#allocation5 + $0x28] sm:$0xff]
    %v129 = vld [vmem:[#allocation5 + $0x30] sm:$0xff]
    %v130 = vld [vmem:[#allocation5 + $0x38] sm:$0xff]
    %v131 = vld [vmem:[#allocation5 + $0x40] sm:$0xff]
    %v132 = vld [vmem:[#allocation5 + $0x48] sm:$0xff]
    %v133 = vld [vmem:[#allocation5 + $0x50] sm:$0xff]
    %v134 = vld [vmem:[#allocation5 + $0x58] sm:$0xff]
    %v135 = vld [vmem:[#allocation5 + $0x60] sm:$0xff]
    %v136 = vld [vmem:[#allocation5 + $0x68] sm:$0xff]
    %v137 = vld [vmem:[#allocation5 + $0x70] sm:$0xff]
    %v138 = vld [vmem:[#allocation5 + $0x78] sm:$0xff]
    %v139 = vld [vmem:[#allocation5 + $0x80] sm:$0xff]
    %v140 = vld [vmem:[#allocation5 + $0x88] sm:$0xff]
    %v141 = vld [vmem:[#allocation5 + $0x90] sm:$0xff]
    %v142 = vld [vmem:[#allocation5 + $0x98] sm:$0xff]
    %v143 = vld [vmem:[#allocation5 + $0xa0] sm:$0xff]
    %v144 = vld [vmem:[#allocation5 + $0xa8] sm:$0xff]
    %v145 = vld [vmem:[#allocation5 + $0xb0] sm:$0xff]
    %v146 = vld [vmem:[#allocation5 + $0xb8] sm:$0xff]
    %v147 = vld [vmem:[#allocation5 + $0xc0] sm:$0xff]
    %v148 = vld [vmem:[#allocation5 + $0xc8] sm:$0xff]
    %v149 = vld [vmem:[#allocation5 + $0xd0] sm:$0xff]
    %v150 = vld [vmem:[#allocation5 + $0xd8] sm:$0xff]
    %v151 = vld [vmem:[#allocation5 + $0xe0] sm:$0xff]
    %v152 = vld [vmem:[#allocation5 + $0xe8] sm:$0xff]
    %v153 = vld [vmem:[#allocation5 + $0xf0] sm:$0xff]
    %v154 = vld [vmem:[#allocation5 + $0xf8] sm:$0xff]
    %v155 = vadd.f32 %v59, %v123
    %v156 = vadd.f32 %v60, %v124
    %v157 = vadd.f32 %v61, %v125
    %v158 = vadd.f32 %v62, %v126
    %v159 = vadd.f32 %v63, %v127
    %v160 = vadd.f32 %v64, %v128
    %v161 = vadd.f32 %v65, %v129
    %v162 = vadd.f32 %v66, %v130
    %v163 = vadd.f32 %v67, %v131
    %v164 = vadd.f32 %v68, %v132
    %v165 = vadd.f32 %v69, %v133
    %v166 = vadd.f32 %v70, %v134
    %v167 = vadd.f32 %v71, %v135
    %v168 = vadd.f32 %v72, %v136
    %v169 = vadd.f32 %v73, %v137
    %v170 = vadd.f32 %v74, %v138
    %v171 = vadd.f32 %v75, %v139
    %v172 = vadd.f32 %v76, %v140
    %v173 = vadd.f32 %v77, %v141
    %v174 = vadd.f32 %v78, %v142
    %v175 = vadd.f32 %v79, %v143
    %v176 = vadd.f32 %v80, %v144
    %v177 = vadd.f32 %v81, %v145
    %v178 = vadd.f32 %v82, %v146
    %v179 = vadd.f32 %v83, %v147
    %v180 = vadd.f32 %v84, %v148
    %v181 = vadd.f32 %v85, %v149
    %v182 = vadd.f32 %v86, %v150
    %v183 = vadd.f32 %v87, %v151
    %v184 = vadd.f32 %v88, %v152
    %v185 = vadd.f32 %v89, %v153
    %v186 = vadd.f32 %v90, %v154
    %v187 = vadd.f32 %v91, %v123
    %v188 = vadd.f32 %v92, %v124
    %v189 = vadd.f32 %v93, %v125
    %v190 = vadd.f32 %v94, %v126
    %v191 = vadd.f32 %v95, %v127
    %v192 = vadd.f32 %v96, %v128
    %v193 = vadd.f32 %v97, %v129
    %v194 = vadd.f32 %v98, %v130
    %v195 = vadd.f32 %v99, %v131
    %v196 = vadd.f32 %v100, %v132
    %v197 = vadd.f32 %v101, %v133
    %v198 = vadd.f32 %v102, %v134
    %v199 = vadd.f32 %v103, %v135
    %v200 = vadd.f32 %v104, %v136
    %v201 = vadd.f32 %v105, %v137
    %v202 = vadd.f32 %v106, %v138
    %v203 = vadd.f32 %v107, %v139
    %v204 = vadd.f32 %v108, %v140
    %v205 = vadd.f32 %v109, %v141
    %v206 = vadd.f32 %v110, %v142
    %v207 = vadd.f32 %v111, %v143
    %v208 = vadd.f32 %v112, %v144
    %v209 = vadd.f32 %v113, %v145
    %v210 = vadd.f32 %v114, %v146
    %v211 = vadd.f32 %v115, %v147
    %v212 = vadd.f32 %v116, %v148
    %v213 = vadd.f32 %v117, %v149
    %v214 = vadd.f32 %v118, %v150
    %v215 = vadd.f32 %v119, %v151
    %v216 = vadd.f32 %v120, %v152
    %v217 = vadd.f32 %v121, %v153
    %v218 = vadd.f32 %v122, %v154
    %v219 = vpack.c.bf16 %v163, %v155
    %v220 = vpack.c.bf16 %v164, %v156
    %v221 = vpack.c.bf16 %v165, %v157
    %v222 = vpack.c.bf16 %v166, %v158
    %v223 = vpack.c.bf16 %v167, %v159
    %v224 = vpack.c.bf16 %v168, %v160
    %v225 = vpack.c.bf16 %v169, %v161
    %v226 = vpack.c.bf16 %v170, %v162
    %v227 = vpack.c.bf16 %v179, %v171
    %v228 = vpack.c.bf16 %v180, %v172
    %v229 = vpack.c.bf16 %v181, %v173
    %v230 = vpack.c.bf16 %v182, %v174
    %v231 = vpack.c.bf16 %v183, %v175
    %v232 = vpack.c.bf16 %v184, %v176
    %v233 = vpack.c.bf16 %v185, %v177
    %v234 = vpack.c.bf16 %v186, %v178
    %v235 = vpack.c.bf16 %v195, %v187
    %v236 = vpack.c.bf16 %v196, %v188
    %v237 = vpack.c.bf16 %v197, %v189
    %v238 = vpack.c.bf16 %v198, %v190
    %v239 = vpack.c.bf16 %v199, %v191
    %v240 = vpack.c.bf16 %v200, %v192
    %v241 = vpack.c.bf16 %v201, %v193
    %v242 = vpack.c.bf16 %v202, %v194
    %v243 = vpack.c.bf16 %v211, %v203
    %v244 = vpack.c.bf16 %v212, %v204
    %v245 = vpack.c.bf16 %v213, %v205
    %v246 = vpack.c.bf16 %v214, %v206
    %v247 = vpack.c.bf16 %v215, %v207
    %v248 = vpack.c.bf16 %v216, %v208
    %v249 = vpack.c.bf16 %v217, %v209
    %v250 = vpack.c.bf16 %v218, %v210
    %v251 = vld [vmem:[#allocation7] sm:$0xff]
    %v252 = vld [vmem:[#allocation7 + $0x8] sm:$0xff]
    %v253 = vld [vmem:[#allocation7 + $0x10] sm:$0xff]
    %v254 = vld [vmem:[#allocation7 + $0x18] sm:$0xff]
    %v255 = vld [vmem:[#allocation7 + $0x20] sm:$0xff]
    %v256 = vld [vmem:[#allocation7 + $0x28] sm:$0xff]
    %v257 = vld [vmem:[#allocation7 + $0x30] sm:$0xff]
    %v258 = vld [vmem:[#allocation7 + $0x38] sm:$0xff]
    %v259 = vld [vmem:[#allocation7 + $0x40] sm:$0xff]
    %v260 = vld [vmem:[#allocation7 + $0x48] sm:$0xff]
    %v261 = vld [vmem:[#allocation7 + $0x50] sm:$0xff]
    %v262 = vld [vmem:[#allocation7 + $0x58] sm:$0xff]
    %v263 = vld [vmem:[#allocation7 + $0x60] sm:$0xff]
    %v264 = vld [vmem:[#allocation7 + $0x68] sm:$0xff]
    %v265 = vld [vmem:[#allocation7 + $0x70] sm:$0xff]
    %v266 = vld [vmem:[#allocation7 + $0x78] sm:$0xff]
    %v267 = vld [vmem:[#allocation7 + $0x80] sm:$0xff]
    %v268 = vld [vmem:[#allocation7 + $0x88] sm:$0xff]
    %v269 = vld [vmem:[#allocation7 + $0x90] sm:$0xff]
    %v270 = vld [vmem:[#allocation7 + $0x98] sm:$0xff]
    %v271 = vld [vmem:[#allocation7 + $0xa0] sm:$0xff]
    %v272 = vld [vmem:[#allocation7 + $0xa8] sm:$0xff]
    %v273 = vld [vmem:[#allocation7 + $0xb0] sm:$0xff]
    %v274 = vld [vmem:[#allocation7 + $0xb8] sm:$0xff]
    %v275 = vld [vmem:[#allocation7 + $0xc0] sm:$0xff]
    %v276 = vld [vmem:[#allocation7 + $0xc8] sm:$0xff]
    %v277 = vld [vmem:[#allocation7 + $0xd0] sm:$0xff]
    %v278 = vld [vmem:[#allocation7 + $0xd8] sm:$0xff]
    %v279 = vld [vmem:[#allocation7 + $0xe0] sm:$0xff]
    %v280 = vld [vmem:[#allocation7 + $0xe8] sm:$0xff]
    %v281 = vld [vmem:[#allocation7 + $0xf0] sm:$0xff]
    %v282 = vld [vmem:[#allocation7 + $0xf8] sm:$0xff]
    %v283 = vld [vmem:[#allocation7 + $0x100] sm:$0xff]
    %v284 = vld [vmem:[#allocation7 + $0x108] sm:$0xff]
    %v285 = vld [vmem:[#allocation7 + $0x110] sm:$0xff]
    %v286 = vld [vmem:[#allocation7 + $0x118] sm:$0xff]
    %v287 = vld [vmem:[#allocation7 + $0x120] sm:$0xff]
    %v288 = vld [vmem:[#allocation7 + $0x128] sm:$0xff]
    %v289 = vld [vmem:[#allocation7 + $0x130] sm:$0xff]
    %v290 = vld [vmem:[#allocation7 + $0x138] sm:$0xff]
    %v291 = vld [vmem:[#allocation7 + $0x140] sm:$0xff]
    %v292 = vld [vmem:[#allocation7 + $0x148] sm:$0xff]
    %v293 = vld [vmem:[#allocation7 + $0x150] sm:$0xff]
    %v294 = vld [vmem:[#allocation7 + $0x158] sm:$0xff]
    %v295 = vld [vmem:[#allocation7 + $0x160] sm:$0xff]
    %v296 = vld [vmem:[#allocation7 + $0x168] sm:$0xff]
    %v297 = vld [vmem:[#allocation7 + $0x170] sm:$0xff]
    %v298 = vld [vmem:[#allocation7 + $0x178] sm:$0xff]
    %v299 = vld [vmem:[#allocation7 + $0x180] sm:$0xff]
    %v300 = vld [vmem:[#allocation7 + $0x188] sm:$0xff]
    %v301 = vld [vmem:[#allocation7 + $0x190] sm:$0xff]
    %v302 = vld [vmem:[#allocation7 + $0x198] sm:$0xff]
    %v303 = vld [vmem:[#allocation7 + $0x1a0] sm:$0xff]
    %v304 = vld [vmem:[#allocation7 + $0x1a8] sm:$0xff]
    %v305 = vld [vmem:[#allocation7 + $0x1b0] sm:$0xff]
    %v306 = vld [vmem:[#allocation7 + $0x1b8] sm:$0xff]
    %v307 = vld [vmem:[#allocation7 + $0x1c0] sm:$0xff]
    %v308 = vld [vmem:[#allocation7 + $0x1c8] sm:$0xff]
    %v309 = vld [vmem:[#allocation7 + $0x1d0] sm:$0xff]
    %v310 = vld [vmem:[#allocation7 + $0x1d8] sm:$0xff]
    %v311 = vld [vmem:[#allocation7 + $0x1e0] sm:$0xff]
    %v312 = vld [vmem:[#allocation7 + $0x1e8] sm:$0xff]
    %v313 = vld [vmem:[#allocation7 + $0x1f0] sm:$0xff]
    %v314 = vld [vmem:[#allocation7 + $0x1f8] sm:$0xff]
    %v315 = vld [vmem:[#allocation7 + $0x200] sm:$0xff]
    %v316 = vld [vmem:[#allocation7 + $0x208] sm:$0xff]
    %v317 = vld [vmem:[#allocation7 + $0x210] sm:$0xff]
    %v318 = vld [vmem:[#allocation7 + $0x218] sm:$0xff]
    %v319 = vld [vmem:[#allocation7 + $0x220] sm:$0xff]
    %v320 = vld [vmem:[#allocation7 + $0x228] sm:$0xff]
    %v321 = vld [vmem:[#allocation7 + $0x230] sm:$0xff]
    %v322 = vld [vmem:[#allocation7 + $0x238] sm:$0xff]
    %v323 = vld [vmem:[#allocation7 + $0x240] sm:$0xff]
    %v324 = vld [vmem:[#allocation7 + $0x248] sm:$0xff]
    %v325 = vld [vmem:[#allocation7 + $0x250] sm:$0xff]
    %v326 = vld [vmem:[#allocation7 + $0x258] sm:$0xff]
    %v327 = vld [vmem:[#allocation7 + $0x260] sm:$0xff]
    %v328 = vld [vmem:[#allocation7 + $0x268] sm:$0xff]
    %v329 = vld [vmem:[#allocation7 + $0x270] sm:$0xff]
    %v330 = vld [vmem:[#allocation7 + $0x278] sm:$0xff]
    %v331 = vld [vmem:[#allocation7 + $0x280] sm:$0xff]
    %v332 = vld [vmem:[#allocation7 + $0x288] sm:$0xff]
    %v333 = vld [vmem:[#allocation7 + $0x290] sm:$0xff]
    %v334 = vld [vmem:[#allocation7 + $0x298] sm:$0xff]
    %v335 = vld [vmem:[#allocation7 + $0x2a0] sm:$0xff]
    %v336 = vld [vmem:[#allocation7 + $0x2a8] sm:$0xff]
    %v337 = vld [vmem:[#allocation7 + $0x2b0] sm:$0xff]
    %v338 = vld [vmem:[#allocation7 + $0x2b8] sm:$0xff]
    %v339 = vld [vmem:[#allocation7 + $0x2c0] sm:$0xff]
    %v340 = vld [vmem:[#allocation7 + $0x2c8] sm:$0xff]
    %v341 = vld [vmem:[#allocation7 + $0x2d0] sm:$0xff]
    %v342 = vld [vmem:[#allocation7 + $0x2d8] sm:$0xff]
    %v343 = vld [vmem:[#allocation7 + $0x2e0] sm:$0xff]
    %v344 = vld [vmem:[#allocation7 + $0x2e8] sm:$0xff]
    %v345 = vld [vmem:[#allocation7 + $0x2f0] sm:$0xff]
    %v346 = vld [vmem:[#allocation7 + $0x2f8] sm:$0xff]
    %v347 = vld [vmem:[#allocation7 + $0x300] sm:$0xff]
    %v348 = vld [vmem:[#allocation7 + $0x308] sm:$0xff]
    %v349 = vld [vmem:[#allocation7 + $0x310] sm:$0xff]
    %v350 = vld [vmem:[#allocation7 + $0x318] sm:$0xff]
    %v351 = vld [vmem:[#allocation7 + $0x320] sm:$0xff]
    %v352 = vld [vmem:[#allocation7 + $0x328] sm:$0xff]
    %v353 = vld [vmem:[#allocation7 + $0x330] sm:$0xff]
    %v354 = vld [vmem:[#allocation7 + $0x338] sm:$0xff]
    %v355 = vld [vmem:[#allocation7 + $0x340] sm:$0xff]
    %v356 = vld [vmem:[#allocation7 + $0x348] sm:$0xff]
    %v357 = vld [vmem:[#allocation7 + $0x350] sm:$0xff]
    %v358 = vld [vmem:[#allocation7 + $0x358] sm:$0xff]
    %v359 = vld [vmem:[#allocation7 + $0x360] sm:$0xff]
    %v360 = vld [vmem:[#allocation7 + $0x368] sm:$0xff]
    %v361 = vld [vmem:[#allocation7 + $0x370] sm:$0xff]
    %v362 = vld [vmem:[#allocation7 + $0x378] sm:$0xff]
    %v363 = vld [vmem:[#allocation7 + $0x380] sm:$0xff]
    %v364 = vld [vmem:[#allocation7 + $0x388] sm:$0xff]
    %v365 = vld [vmem:[#allocation7 + $0x390] sm:$0xff]
    %v366 = vld [vmem:[#allocation7 + $0x398] sm:$0xff]
    %v367 = vld [vmem:[#allocation7 + $0x3a0] sm:$0xff]
    %v368 = vld [vmem:[#allocation7 + $0x3a8] sm:$0xff]
    %v369 = vld [vmem:[#allocation7 + $0x3b0] sm:$0xff]
    %v370 = vld [vmem:[#allocation7 + $0x3b8] sm:$0xff]
    %v371 = vld [vmem:[#allocation7 + $0x3c0] sm:$0xff]
    %v372 = vld [vmem:[#allocation7 + $0x3c8] sm:$0xff]
    %v373 = vld [vmem:[#allocation7 + $0x3d0] sm:$0xff]
    %v374 = vld [vmem:[#allocation7 + $0x3d8] sm:$0xff]
    %v375 = vld [vmem:[#allocation7 + $0x3e0] sm:$0xff]
    %v376 = vld [vmem:[#allocation7 + $0x3e8] sm:$0xff]
    %v377 = vld [vmem:[#allocation7 + $0x3f0] sm:$0xff]
    %v378 = vld [vmem:[#allocation7 + $0x3f8] sm:$0xff]
    %v379 = vld [vmem:[#allocation7 + $0x400] sm:$0xff]
    %v380 = vld [vmem:[#allocation7 + $0x408] sm:$0xff]
    %v381 = vld [vmem:[#allocation7 + $0x410] sm:$0xff]
    %v382 = vld [vmem:[#allocation7 + $0x418] sm:$0xff]
    %v383 = vld [vmem:[#allocation7 + $0x420] sm:$0xff]
    %v384 = vld [vmem:[#allocation7 + $0x428] sm:$0xff]
    %v385 = vld [vmem:[#allocation7 + $0x430] sm:$0xff]
    %v386 = vld [vmem:[#allocation7 + $0x438] sm:$0xff]
    %v387 = vld [vmem:[#allocation7 + $0x440] sm:$0xff]
    %v388 = vld [vmem:[#allocation7 + $0x448] sm:$0xff]
    %v389 = vld [vmem:[#allocation7 + $0x450] sm:$0xff]
    %v390 = vld [vmem:[#allocation7 + $0x458] sm:$0xff]
    %v391 = vld [vmem:[#allocation7 + $0x460] sm:$0xff]
    %v392 = vld [vmem:[#allocation7 + $0x468] sm:$0xff]
    %v393 = vld [vmem:[#allocation7 + $0x470] sm:$0xff]
    %v394 = vld [vmem:[#allocation7 + $0x478] sm:$0xff]
    %v395 = vld [vmem:[#allocation7 + $0x480] sm:$0xff]
    %v396 = vld [vmem:[#allocation7 + $0x488] sm:$0xff]
    %v397 = vld [vmem:[#allocation7 + $0x490] sm:$0xff]
    %v398 = vld [vmem:[#allocation7 + $0x498] sm:$0xff]
    %v399 = vld [vmem:[#allocation7 + $0x4a0] sm:$0xff]
    %v400 = vld [vmem:[#allocation7 + $0x4a8] sm:$0xff]
    %v401 = vld [vmem:[#allocation7 + $0x4b0] sm:$0xff]
    %v402 = vld [vmem:[#allocation7 + $0x4b8] sm:$0xff]
    %v403 = vld [vmem:[#allocation7 + $0x4c0] sm:$0xff]
    %v404 = vld [vmem:[#allocation7 + $0x4c8] sm:$0xff]
    %v405 = vld [vmem:[#allocation7 + $0x4d0] sm:$0xff]
    %v406 = vld [vmem:[#allocation7 + $0x4d8] sm:$0xff]
    %v407 = vld [vmem:[#allocation7 + $0x4e0] sm:$0xff]
    %v408 = vld [vmem:[#allocation7 + $0x4e8] sm:$0xff]
    %v409 = vld [vmem:[#allocation7 + $0x4f0] sm:$0xff]
    %v410 = vld [vmem:[#allocation7 + $0x4f8] sm:$0xff]
    %v411 = vld [vmem:[#allocation7 + $0x500] sm:$0xff]
    %v412 = vld [vmem:[#allocation7 + $0x508] sm:$0xff]
    %v413 = vld [vmem:[#allocation7 + $0x510] sm:$0xff]
    %v414 = vld [vmem:[#allocation7 + $0x518] sm:$0xff]
    %v415 = vld [vmem:[#allocation7 + $0x520] sm:$0xff]
    %v416 = vld [vmem:[#allocation7 + $0x528] sm:$0xff]
    %v417 = vld [vmem:[#allocation7 + $0x530] sm:$0xff]
    %v418 = vld [vmem:[#allocation7 + $0x538] sm:$0xff]
    %v419 = vld [vmem:[#allocation7 + $0x540] sm:$0xff]
    %v420 = vld [vmem:[#allocation7 + $0x548] sm:$0xff]
    %v421 = vld [vmem:[#allocation7 + $0x550] sm:$0xff]
    %v422 = vld [vmem:[#allocation7 + $0x558] sm:$0xff]
    %v423 = vld [vmem:[#allocation7 + $0x560] sm:$0xff]
    %v424 = vld [vmem:[#allocation7 + $0x568] sm:$0xff]
    %v425 = vld [vmem:[#allocation7 + $0x570] sm:$0xff]
    %v426 = vld [vmem:[#allocation7 + $0x578] sm:$0xff]
    %v427 = vld [vmem:[#allocation7 + $0x580] sm:$0xff]
    %v428 = vld [vmem:[#allocation7 + $0x588] sm:$0xff]
    %v429 = vld [vmem:[#allocation7 + $0x590] sm:$0xff]
    %v430 = vld [vmem:[#allocation7 + $0x598] sm:$0xff]
    %v431 = vld [vmem:[#allocation7 + $0x5a0] sm:$0xff]
    %v432 = vld [vmem:[#allocation7 + $0x5a8] sm:$0xff]
    %v433 = vld [vmem:[#allocation7 + $0x5b0] sm:$0xff]
    %v434 = vld [vmem:[#allocation7 + $0x5b8] sm:$0xff]
    %v435 = vld [vmem:[#allocation7 + $0x5c0] sm:$0xff]
    %v436 = vld [vmem:[#allocation7 + $0x5c8] sm:$0xff]
    %v437 = vld [vmem:[#allocation7 + $0x5d0] sm:$0xff]
    %v438 = vld [vmem:[#allocation7 + $0x5d8] sm:$0xff]
    %v439 = vld [vmem:[#allocation7 + $0x5e0] sm:$0xff]
    %v440 = vld [vmem:[#allocation7 + $0x5e8] sm:$0xff]
    %v441 = vld [vmem:[#allocation7 + $0x5f0] sm:$0xff]
    %v442 = vld [vmem:[#allocation7 + $0x5f8] sm:$0xff]
    %v443 = vld [vmem:[#allocation7 + $0x600] sm:$0xff]
    %v444 = vld [vmem:[#allocation7 + $0x608] sm:$0xff]
    %v445 = vld [vmem:[#allocation7 + $0x610] sm:$0xff]
    %v446 = vld [vmem:[#allocation7 + $0x618] sm:$0xff]
    %v447 = vld [vmem:[#allocation7 + $0x620] sm:$0xff]
    %v448 = vld [vmem:[#allocation7 + $0x628] sm:$0xff]
    %v449 = vld [vmem:[#allocation7 + $0x630] sm:$0xff]
    %v450 = vld [vmem:[#allocation7 + $0x638] sm:$0xff]
    %v451 = vld [vmem:[#allocation7 + $0x640] sm:$0xff]
    %v452 = vld [vmem:[#allocation7 + $0x648] sm:$0xff]
    %v453 = vld [vmem:[#allocation7 + $0x650] sm:$0xff]
    %v454 = vld [vmem:[#allocation7 + $0x658] sm:$0xff]
    %v455 = vld [vmem:[#allocation7 + $0x660] sm:$0xff]
    %v456 = vld [vmem:[#allocation7 + $0x668] sm:$0xff]
    %v457 = vld [vmem:[#allocation7 + $0x670] sm:$0xff]
    %v458 = vld [vmem:[#allocation7 + $0x678] sm:$0xff]
    %v459 = vld [vmem:[#allocation7 + $0x680] sm:$0xff]
    %v460 = vld [vmem:[#allocation7 + $0x688] sm:$0xff]
    %v461 = vld [vmem:[#allocation7 + $0x690] sm:$0xff]
    %v462 = vld [vmem:[#allocation7 + $0x698] sm:$0xff]
    %v463 = vld [vmem:[#allocation7 + $0x6a0] sm:$0xff]
    %v464 = vld [vmem:[#allocation7 + $0x6a8] sm:$0xff]
    %v465 = vld [vmem:[#allocation7 + $0x6b0] sm:$0xff]
    %v466 = vld [vmem:[#allocation7 + $0x6b8] sm:$0xff]
    %v467 = vld [vmem:[#allocation7 + $0x6c0] sm:$0xff]
    %v468 = vld [vmem:[#allocation7 + $0x6c8] sm:$0xff]
    %v469 = vld [vmem:[#allocation7 + $0x6d0] sm:$0xff]
    %v470 = vld [vmem:[#allocation7 + $0x6d8] sm:$0xff]
    %v471 = vld [vmem:[#allocation7 + $0x6e0] sm:$0xff]
    %v472 = vld [vmem:[#allocation7 + $0x6e8] sm:$0xff]
    %v473 = vld [vmem:[#allocation7 + $0x6f0] sm:$0xff]
    %v474 = vld [vmem:[#allocation7 + $0x6f8] sm:$0xff]
    %v475 = vld [vmem:[#allocation7 + $0x700] sm:$0xff]
    %v476 = vld [vmem:[#allocation7 + $0x708] sm:$0xff]
    %v477 = vld [vmem:[#allocation7 + $0x710] sm:$0xff]
    %v478 = vld [vmem:[#allocation7 + $0x718] sm:$0xff]
    %v479 = vld [vmem:[#allocation7 + $0x720] sm:$0xff]
    %v480 = vld [vmem:[#allocation7 + $0x728] sm:$0xff]
    %v481 = vld [vmem:[#allocation7 + $0x730] sm:$0xff]
    %v482 = vld [vmem:[#allocation7 + $0x738] sm:$0xff]
    %v483 = vld [vmem:[#allocation7 + $0x740] sm:$0xff]
    %v484 = vld [vmem:[#allocation7 + $0x748] sm:$0xff]
    %v485 = vld [vmem:[#allocation7 + $0x750] sm:$0xff]
    %v486 = vld [vmem:[#allocation7 + $0x758] sm:$0xff]
    %v487 = vld [vmem:[#allocation7 + $0x760] sm:$0xff]
    %v488 = vld [vmem:[#allocation7 + $0x768] sm:$0xff]
    %v489 = vld [vmem:[#allocation7 + $0x770] sm:$0xff]
    %v490 = vld [vmem:[#allocation7 + $0x778] sm:$0xff]
    %v491 = vld [vmem:[#allocation7 + $0x780] sm:$0xff]
    %v492 = vld [vmem:[#allocation7 + $0x788] sm:$0xff]
    %v493 = vld [vmem:[#allocation7 + $0x790] sm:$0xff]
    %v494 = vld [vmem:[#allocation7 + $0x798] sm:$0xff]
    %v495 = vld [vmem:[#allocation7 + $0x7a0] sm:$0xff]
    %v496 = vld [vmem:[#allocation7 + $0x7a8] sm:$0xff]
    %v497 = vld [vmem:[#allocation7 + $0x7b0] sm:$0xff]
    %v498 = vld [vmem:[#allocation7 + $0x7b8] sm:$0xff]
    %v499 = vld [vmem:[#allocation7 + $0x7c0] sm:$0xff]
    %v500 = vld [vmem:[#allocation7 + $0x7c8] sm:$0xff]
    %v501 = vld [vmem:[#allocation7 + $0x7d0] sm:$0xff]
    %v502 = vld [vmem:[#allocation7 + $0x7d8] sm:$0xff]
    %v503 = vld [vmem:[#allocation7 + $0x7e0] sm:$0xff]
    %v504 = vld [vmem:[#allocation7 + $0x7e8] sm:$0xff]
    %v505 = vld [vmem:[#allocation7 + $0x7f0] sm:$0xff]
    %v506 = vld [vmem:[#allocation7 + $0x7f8] sm:$0xff]
    %v507 = vld [vmem:[%s3] sm:$0xf]
    %v509 = vlaneseq
    %v510 = vshrl.u32 %v509, 7
    %v511 = vsub.s32 0, %v510
    %v512 = vrot.slane %v507, %v511
    %v513 = vlaneseq
    %v514 = vshrl.u32 %v513, 7
    %v515 = vsub.s32 1, %v514
    %v516 = vrot.slane %v507, %v515
    %v517 = vlaneseq
    %v518 = vshrl.u32 %v517, 7
    %v519 = vsub.s32 2, %v518
    %v520 = vrot.slane %v507, %v519
    %v521 = vlaneseq
    %v522 = vshrl.u32 %v521, 7
    %v523 = vsub.s32 3, %v522
    %v524 = vrot.slane %v507, %v523
    %v785 = vunpack.c.l.b16 %v251
    %v786 = vunpack.c.h.b16 %v251
    %v787 = vunpack.c.l.b16 %v252
    %v788 = vunpack.c.h.b16 %v252
    %v789 = vunpack.c.l.b16 %v253
    %v790 = vunpack.c.h.b16 %v253
    %v791 = vunpack.c.l.b16 %v254
    %v792 = vunpack.c.h.b16 %v254
    %v793 = vunpack.c.l.b16 %v255
    %v794 = vunpack.c.h.b16 %v255
    %v795 = vunpack.c.l.b16 %v256
    %v796 = vunpack.c.h.b16 %v256
    %v797 = vunpack.c.l.b16 %v257
    %v798 = vunpack.c.h.b16 %v257
    %v799 = vunpack.c.l.b16 %v258
    %v800 = vunpack.c.h.b16 %v258
    %v801 = vunpack.c.l.b16 %v259
    %v802 = vunpack.c.h.b16 %v259
    %v803 = vunpack.c.l.b16 %v260
    %v804 = vunpack.c.h.b16 %v260
    %v805 = vunpack.c.l.b16 %v261
    %v806 = vunpack.c.h.b16 %v261
    %v807 = vunpack.c.l.b16 %v262
    %v808 = vunpack.c.h.b16 %v262
    %v809 = vunpack.c.l.b16 %v263
    %v810 = vunpack.c.h.b16 %v263
    %v811 = vunpack.c.l.b16 %v264
    %v812 = vunpack.c.h.b16 %v264
    %v813 = vunpack.c.l.b16 %v265
    %v814 = vunpack.c.h.b16 %v265
    %v815 = vunpack.c.l.b16 %v266
    %v816 = vunpack.c.h.b16 %v266
    %v817 = vunpack.c.l.b16 %v267
    %v818 = vunpack.c.h.b16 %v267
    %v819 = vunpack.c.l.b16 %v268
    %v820 = vunpack.c.h.b16 %v268
    %v821 = vunpack.c.l.b16 %v269
    %v822 = vunpack.c.h.b16 %v269
    %v823 = vunpack.c.l.b16 %v270
    %v824 = vunpack.c.h.b16 %v270
    %v825 = vunpack.c.l.b16 %v271
    %v826 = vunpack.c.h.b16 %v271
    %v827 = vunpack.c.l.b16 %v272
    %v828 = vunpack.c.h.b16 %v272
    %v829 = vunpack.c.l.b16 %v273
    %v830 = vunpack.c.h.b16 %v273
    %v831 = vunpack.c.l.b16 %v274
    %v832 = vunpack.c.h.b16 %v274
    %v833 = vunpack.c.l.b16 %v275
    %v834 = vunpack.c.h.b16 %v275
    %v835 = vunpack.c.l.b16 %v276
    %v836 = vunpack.c.h.b16 %v276
    %v837 = vunpack.c.l.b16 %v277
    %v838 = vunpack.c.h.b16 %v277
    %v839 = vunpack.c.l.b16 %v278
    %v840 = vunpack.c.h.b16 %v278
    %v841 = vunpack.c.l.b16 %v279
    %v842 = vunpack.c.h.b16 %v279
    %v843 = vunpack.c.l.b16 %v280
    %v844 = vunpack.c.h.b16 %v280
    %v845 = vunpack.c.l.b16 %v281
    %v846 = vunpack.c.h.b16 %v281
    %v847 = vunpack.c.l.b16 %v282
    %v848 = vunpack.c.h.b16 %v282
    %v849 = vunpack.c.l.b16 %v283
    %v850 = vunpack.c.h.b16 %v283
    %v851 = vunpack.c.l.b16 %v284
    %v852 = vunpack.c.h.b16 %v284
    %v853 = vunpack.c.l.b16 %v285
    %v854 = vunpack.c.h.b16 %v285
    %v855 = vunpack.c.l.b16 %v286
    %v856 = vunpack.c.h.b16 %v286
    %v857 = vunpack.c.l.b16 %v287
    %v858 = vunpack.c.h.b16 %v287
    %v859 = vunpack.c.l.b16 %v288
    %v860 = vunpack.c.h.b16 %v288
    %v861 = vunpack.c.l.b16 %v289
    %v862 = vunpack.c.h.b16 %v289
    %v863 = vunpack.c.l.b16 %v290
    %v864 = vunpack.c.h.b16 %v290
    %v865 = vunpack.c.l.b16 %v291
    %v866 = vunpack.c.h.b16 %v291
    %v867 = vunpack.c.l.b16 %v292
    %v868 = vunpack.c.h.b16 %v292
    %v869 = vunpack.c.l.b16 %v293
    %v870 = vunpack.c.h.b16 %v293
    %v871 = vunpack.c.l.b16 %v294
    %v872 = vunpack.c.h.b16 %v294
    %v873 = vunpack.c.l.b16 %v295
    %v874 = vunpack.c.h.b16 %v295
    %v875 = vunpack.c.l.b16 %v296
    %v876 = vunpack.c.h.b16 %v296
    %v877 = vunpack.c.l.b16 %v297
    %v878 = vunpack.c.h.b16 %v297
    %v879 = vunpack.c.l.b16 %v298
    %v880 = vunpack.c.h.b16 %v298
    %v881 = vunpack.c.l.b16 %v299
    %v882 = vunpack.c.h.b16 %v299
    %v883 = vunpack.c.l.b16 %v300
    %v884 = vunpack.c.h.b16 %v300
    %v885 = vunpack.c.l.b16 %v301
    %v886 = vunpack.c.h.b16 %v301
    %v887 = vunpack.c.l.b16 %v302
    %v888 = vunpack.c.h.b16 %v302
    %v889 = vunpack.c.l.b16 %v303
    %v890 = vunpack.c.h.b16 %v303
    %v891 = vunpack.c.l.b16 %v304
    %v892 = vunpack.c.h.b16 %v304
    %v893 = vunpack.c.l.b16 %v305
    %v894 = vunpack.c.h.b16 %v305
    %v895 = vunpack.c.l.b16 %v306
    %v896 = vunpack.c.h.b16 %v306
    %v897 = vunpack.c.l.b16 %v307
    %v898 = vunpack.c.h.b16 %v307
    %v899 = vunpack.c.l.b16 %v308
    %v900 = vunpack.c.h.b16 %v308
    %v901 = vunpack.c.l.b16 %v309
    %v902 = vunpack.c.h.b16 %v309
    %v903 = vunpack.c.l.b16 %v310
    %v904 = vunpack.c.h.b16 %v310
    %v905 = vunpack.c.l.b16 %v311
    %v906 = vunpack.c.h.b16 %v311
    %v907 = vunpack.c.l.b16 %v312
    %v908 = vunpack.c.h.b16 %v312
    %v909 = vunpack.c.l.b16 %v313
    %v910 = vunpack.c.h.b16 %v313
    %v911 = vunpack.c.l.b16 %v314
    %v912 = vunpack.c.h.b16 %v314
    %v913 = vunpack.c.l.b16 %v315
    %v914 = vunpack.c.h.b16 %v315
    %v915 = vunpack.c.l.b16 %v316
    %v916 = vunpack.c.h.b16 %v316
    %v917 = vunpack.c.l.b16 %v317
    %v918 = vunpack.c.h.b16 %v317
    %v919 = vunpack.c.l.b16 %v318
    %v920 = vunpack.c.h.b16 %v318
    %v921 = vunpack.c.l.b16 %v319
    %v922 = vunpack.c.h.b16 %v319
    %v923 = vunpack.c.l.b16 %v320
    %v924 = vunpack.c.h.b16 %v320
    %v925 = vunpack.c.l.b16 %v321
    %v926 = vunpack.c.h.b16 %v321
    %v927 = vunpack.c.l.b16 %v322
    %v928 = vunpack.c.h.b16 %v322
    %v929 = vunpack.c.l.b16 %v323
    %v930 = vunpack.c.h.b16 %v323
    %v931 = vunpack.c.l.b16 %v324
    %v932 = vunpack.c.h.b16 %v324
    %v933 = vunpack.c.l.b16 %v325
    %v934 = vunpack.c.h.b16 %v325
    %v935 = vunpack.c.l.b16 %v326
    %v936 = vunpack.c.h.b16 %v326
    %v937 = vunpack.c.l.b16 %v327
    %v938 = vunpack.c.h.b16 %v327
    %v939 = vunpack.c.l.b16 %v328
    %v940 = vunpack.c.h.b16 %v328
    %v941 = vunpack.c.l.b16 %v329
    %v942 = vunpack.c.h.b16 %v329
    %v943 = vunpack.c.l.b16 %v330
    %v944 = vunpack.c.h.b16 %v330
    %v945 = vunpack.c.l.b16 %v331
    %v946 = vunpack.c.h.b16 %v331
    %v947 = vunpack.c.l.b16 %v332
    %v948 = vunpack.c.h.b16 %v332
    %v949 = vunpack.c.l.b16 %v333
    %v950 = vunpack.c.h.b16 %v333
    %v951 = vunpack.c.l.b16 %v334
    %v952 = vunpack.c.h.b16 %v334
    %v953 = vunpack.c.l.b16 %v335
    %v954 = vunpack.c.h.b16 %v335
    %v955 = vunpack.c.l.b16 %v336
    %v956 = vunpack.c.h.b16 %v336
    %v957 = vunpack.c.l.b16 %v337
    %v958 = vunpack.c.h.b16 %v337
    %v959 = vunpack.c.l.b16 %v338
    %v960 = vunpack.c.h.b16 %v338
    %v961 = vunpack.c.l.b16 %v339
    %v962 = vunpack.c.h.b16 %v339
    %v963 = vunpack.c.l.b16 %v340
    %v964 = vunpack.c.h.b16 %v340
    %v965 = vunpack.c.l.b16 %v341
    %v966 = vunpack.c.h.b16 %v341
    %v967 = vunpack.c.l.b16 %v342
    %v968 = vunpack.c.h.b16 %v342
    %v969 = vunpack.c.l.b16 %v343
    %v970 = vunpack.c.h.b16 %v343
    %v971 = vunpack.c.l.b16 %v344
    %v972 = vunpack.c.h.b16 %v344
    %v973 = vunpack.c.l.b16 %v345
    %v974 = vunpack.c.h.b16 %v345
    %v975 = vunpack.c.l.b16 %v346
    %v976 = vunpack.c.h.b16 %v346
    %v977 = vunpack.c.l.b16 %v347
    %v978 = vunpack.c.h.b16 %v347
    %v979 = vunpack.c.l.b16 %v348
    %v980 = vunpack.c.h.b16 %v348
    %v981 = vunpack.c.l.b16 %v349
    %v982 = vunpack.c.h.b16 %v349
    %v983 = vunpack.c.l.b16 %v350
    %v984 = vunpack.c.h.b16 %v350
    %v985 = vunpack.c.l.b16 %v351
    %v986 = vunpack.c.h.b16 %v351
    %v987 = vunpack.c.l.b16 %v352
    %v988 = vunpack.c.h.b16 %v352
    %v989 = vunpack.c.l.b16 %v353
    %v990 = vunpack.c.h.b16 %v353
    %v991 = vunpack.c.l.b16 %v354
    %v992 = vunpack.c.h.b16 %v354
    %v993 = vunpack.c.l.b16 %v355
    %v994 = vunpack.c.h.b16 %v355
    %v995 = vunpack.c.l.b16 %v356
    %v996 = vunpack.c.h.b16 %v356
    %v997 = vunpack.c.l.b16 %v357
    %v998 = vunpack.c.h.b16 %v357
    %v999 = vunpack.c.l.b16 %v358
    %v1000 = vunpack.c.h.b16 %v358
    %v1001 = vunpack.c.l.b16 %v359
    %v1002 = vunpack.c.h.b16 %v359
    %v1003 = vunpack.c.l.b16 %v360
    %v1004 = vunpack.c.h.b16 %v360
    %v1005 = vunpack.c.l.b16 %v361
    %v1006 = vunpack.c.h.b16 %v361
    %v1007 = vunpack.c.l.b16 %v362
    %v1008 = vunpack.c.h.b16 %v362
    %v1009 = vunpack.c.l.b16 %v363
    %v1010 = vunpack.c.h.b16 %v363
    %v1011 = vunpack.c.l.b16 %v364
    %v1012 = vunpack.c.h.b16 %v364
    %v1013 = vunpack.c.l.b16 %v365
    %v1014 = vunpack.c.h.b16 %v365
    %v1015 = vunpack.c.l.b16 %v366
    %v1016 = vunpack.c.h.b16 %v366
    %v1017 = vunpack.c.l.b16 %v367
    %v1018 = vunpack.c.h.b16 %v367
    %v1019 = vunpack.c.l.b16 %v368
    %v1020 = vunpack.c.h.b16 %v368
    %v1021 = vunpack.c.l.b16 %v369
    %v1022 = vunpack.c.h.b16 %v369
    %v1023 = vunpack.c.l.b16 %v370
    %v1024 = vunpack.c.h.b16 %v370
    %v1025 = vunpack.c.l.b16 %v371
    %v1026 = vunpack.c.h.b16 %v371
    %v1027 = vunpack.c.l.b16 %v372
    %v1028 = vunpack.c.h.b16 %v372
    %v1029 = vunpack.c.l.b16 %v373
    %v1030 = vunpack.c.h.b16 %v373
    %v1031 = vunpack.c.l.b16 %v374
    %v1032 = vunpack.c.h.b16 %v374
    %v1033 = vunpack.c.l.b16 %v375
    %v1034 = vunpack.c.h.b16 %v375
    %v1035 = vunpack.c.l.b16 %v376
    %v1036 = vunpack.c.h.b16 %v376
    %v1037 = vunpack.c.l.b16 %v377
    %v1038 = vunpack.c.h.b16 %v377
    %v1039 = vunpack.c.l.b16 %v378
    %v1040 = vunpack.c.h.b16 %v378
    %v1041 = vunpack.c.l.b16 %v379
    %v1042 = vunpack.c.h.b16 %v379
    %v1043 = vunpack.c.l.b16 %v380
    %v1044 = vunpack.c.h.b16 %v380
    %v1045 = vunpack.c.l.b16 %v381
    %v1046 = vunpack.c.h.b16 %v381
    %v1047 = vunpack.c.l.b16 %v382
    %v1048 = vunpack.c.h.b16 %v382
    %v1049 = vunpack.c.l.b16 %v383
    %v1050 = vunpack.c.h.b16 %v383
    %v1051 = vunpack.c.l.b16 %v384
    %v1052 = vunpack.c.h.b16 %v384
    %v1053 = vunpack.c.l.b16 %v385
    %v1054 = vunpack.c.h.b16 %v385
    %v1055 = vunpack.c.l.b16 %v386
    %v1056 = vunpack.c.h.b16 %v386
    %v1057 = vunpack.c.l.b16 %v387
    %v1058 = vunpack.c.h.b16 %v387
    %v1059 = vunpack.c.l.b16 %v388
    %v1060 = vunpack.c.h.b16 %v388
    %v1061 = vunpack.c.l.b16 %v389
    %v1062 = vunpack.c.h.b16 %v389
    %v1063 = vunpack.c.l.b16 %v390
    %v1064 = vunpack.c.h.b16 %v390
    %v1065 = vunpack.c.l.b16 %v391
    %v1066 = vunpack.c.h.b16 %v391
    %v1067 = vunpack.c.l.b16 %v392
    %v1068 = vunpack.c.h.b16 %v392
    %v1069 = vunpack.c.l.b16 %v393
    %v1070 = vunpack.c.h.b16 %v393
    %v1071 = vunpack.c.l.b16 %v394
    %v1072 = vunpack.c.h.b16 %v394
    %v1073 = vunpack.c.l.b16 %v395
    %v1074 = vunpack.c.h.b16 %v395
    %v1075 = vunpack.c.l.b16 %v396
    %v1076 = vunpack.c.h.b16 %v396
    %v1077 = vunpack.c.l.b16 %v397
    %v1078 = vunpack.c.h.b16 %v397
    %v1079 = vunpack.c.l.b16 %v398
    %v1080 = vunpack.c.h.b16 %v398
    %v1081 = vunpack.c.l.b16 %v399
    %v1082 = vunpack.c.h.b16 %v399
    %v1083 = vunpack.c.l.b16 %v400
    %v1084 = vunpack.c.h.b16 %v400
    %v1085 = vunpack.c.l.b16 %v401
    %v1086 = vunpack.c.h.b16 %v401
    %v1087 = vunpack.c.l.b16 %v402
    %v1088 = vunpack.c.h.b16 %v402
    %v1089 = vunpack.c.l.b16 %v403
    %v1090 = vunpack.c.h.b16 %v403
    %v1091 = vunpack.c.l.b16 %v404
    %v1092 = vunpack.c.h.b16 %v404
    %v1093 = vunpack.c.l.b16 %v405
    %v1094 = vunpack.c.h.b16 %v405
    %v1095 = vunpack.c.l.b16 %v406
    %v1096 = vunpack.c.h.b16 %v406
    %v1097 = vunpack.c.l.b16 %v407
    %v1098 = vunpack.c.h.b16 %v407
    %v1099 = vunpack.c.l.b16 %v408
    %v1100 = vunpack.c.h.b16 %v408
    %v1101 = vunpack.c.l.b16 %v409
    %v1102 = vunpack.c.h.b16 %v409
    %v1103 = vunpack.c.l.b16 %v410
    %v1104 = vunpack.c.h.b16 %v410
    %v1105 = vunpack.c.l.b16 %v411
    %v1106 = vunpack.c.h.b16 %v411
    %v1107 = vunpack.c.l.b16 %v412
    %v1108 = vunpack.c.h.b16 %v412
    %v1109 = vunpack.c.l.b16 %v413
    %v1110 = vunpack.c.h.b16 %v413
    %v1111 = vunpack.c.l.b16 %v414
    %v1112 = vunpack.c.h.b16 %v414
    %v1113 = vunpack.c.l.b16 %v415
    %v1114 = vunpack.c.h.b16 %v415
    %v1115 = vunpack.c.l.b16 %v416
    %v1116 = vunpack.c.h.b16 %v416
    %v1117 = vunpack.c.l.b16 %v417
    %v1118 = vunpack.c.h.b16 %v417
    %v1119 = vunpack.c.l.b16 %v418
    %v1120 = vunpack.c.h.b16 %v418
    %v1121 = vunpack.c.l.b16 %v419
    %v1122 = vunpack.c.h.b16 %v419
    %v1123 = vunpack.c.l.b16 %v420
    %v1124 = vunpack.c.h.b16 %v420
    %v1125 = vunpack.c.l.b16 %v421
    %v1126 = vunpack.c.h.b16 %v421
    %v1127 = vunpack.c.l.b16 %v422
    %v1128 = vunpack.c.h.b16 %v422
    %v1129 = vunpack.c.l.b16 %v423
    %v1130 = vunpack.c.h.b16 %v423
    %v1131 = vunpack.c.l.b16 %v424
    %v1132 = vunpack.c.h.b16 %v424
    %v1133 = vunpack.c.l.b16 %v425
    %v1134 = vunpack.c.h.b16 %v425
    %v1135 = vunpack.c.l.b16 %v426
    %v1136 = vunpack.c.h.b16 %v426
    %v1137 = vunpack.c.l.b16 %v427
    %v1138 = vunpack.c.h.b16 %v427
    %v1139 = vunpack.c.l.b16 %v428
    %v1140 = vunpack.c.h.b16 %v428
    %v1141 = vunpack.c.l.b16 %v429
    %v1142 = vunpack.c.h.b16 %v429
    %v1143 = vunpack.c.l.b16 %v430
    %v1144 = vunpack.c.h.b16 %v430
    %v1145 = vunpack.c.l.b16 %v431
    %v1146 = vunpack.c.h.b16 %v431
    %v1147 = vunpack.c.l.b16 %v432
    %v1148 = vunpack.c.h.b16 %v432
    %v1149 = vunpack.c.l.b16 %v433
    %v1150 = vunpack.c.h.b16 %v433
    %v1151 = vunpack.c.l.b16 %v434
    %v1152 = vunpack.c.h.b16 %v434
    %v1153 = vunpack.c.l.b16 %v435
    %v1154 = vunpack.c.h.b16 %v435
    %v1155 = vunpack.c.l.b16 %v436
    %v1156 = vunpack.c.h.b16 %v436
    %v1157 = vunpack.c.l.b16 %v437
    %v1158 = vunpack.c.h.b16 %v437
    %v1159 = vunpack.c.l.b16 %v438
    %v1160 = vunpack.c.h.b16 %v438
    %v1161 = vunpack.c.l.b16 %v439
    %v1162 = vunpack.c.h.b16 %v439
    %v1163 = vunpack.c.l.b16 %v440
    %v1164 = vunpack.c.h.b16 %v440
    %v1165 = vunpack.c.l.b16 %v441
    %v1166 = vunpack.c.h.b16 %v441
    %v1167 = vunpack.c.l.b16 %v442
    %v1168 = vunpack.c.h.b16 %v442
    %v1169 = vunpack.c.l.b16 %v443
    %v1170 = vunpack.c.h.b16 %v443
    %v1171 = vunpack.c.l.b16 %v444
    %v1172 = vunpack.c.h.b16 %v444
    %v1173 = vunpack.c.l.b16 %v445
    %v1174 = vunpack.c.h.b16 %v445
    %v1175 = vunpack.c.l.b16 %v446
    %v1176 = vunpack.c.h.b16 %v446
    %v1177 = vunpack.c.l.b16 %v447
    %v1178 = vunpack.c.h.b16 %v447
    %v1179 = vunpack.c.l.b16 %v448
    %v1180 = vunpack.c.h.b16 %v448
    %v1181 = vunpack.c.l.b16 %v449
    %v1182 = vunpack.c.h.b16 %v449
    %v1183 = vunpack.c.l.b16 %v450
    %v1184 = vunpack.c.h.b16 %v450
    %v1185 = vunpack.c.l.b16 %v451
    %v1186 = vunpack.c.h.b16 %v451
    %v1187 = vunpack.c.l.b16 %v452
    %v1188 = vunpack.c.h.b16 %v452
    %v1189 = vunpack.c.l.b16 %v453
    %v1190 = vunpack.c.h.b16 %v453
    %v1191 = vunpack.c.l.b16 %v454
    %v1192 = vunpack.c.h.b16 %v454
    %v1193 = vunpack.c.l.b16 %v455
    %v1194 = vunpack.c.h.b16 %v455
    %v1195 = vunpack.c.l.b16 %v456
    %v1196 = vunpack.c.h.b16 %v456
    %v1197 = vunpack.c.l.b16 %v457
    %v1198 = vunpack.c.h.b16 %v457
    %v1199 = vunpack.c.l.b16 %v458
    %v1200 = vunpack.c.h.b16 %v458
    %v1201 = vunpack.c.l.b16 %v459
    %v1202 = vunpack.c.h.b16 %v459
    %v1203 = vunpack.c.l.b16 %v460
    %v1204 = vunpack.c.h.b16 %v460
    %v1205 = vunpack.c.l.b16 %v461
    %v1206 = vunpack.c.h.b16 %v461
    %v1207 = vunpack.c.l.b16 %v462
    %v1208 = vunpack.c.h.b16 %v462
    %v1209 = vunpack.c.l.b16 %v463
    %v1210 = vunpack.c.h.b16 %v463
    %v1211 = vunpack.c.l.b16 %v464
    %v1212 = vunpack.c.h.b16 %v464
    %v1213 = vunpack.c.l.b16 %v465
    %v1214 = vunpack.c.h.b16 %v465
    %v1215 = vunpack.c.l.b16 %v466
    %v1216 = vunpack.c.h.b16 %v466
    %v1217 = vunpack.c.l.b16 %v467
    %v1218 = vunpack.c.h.b16 %v467
    %v1219 = vunpack.c.l.b16 %v468
    %v1220 = vunpack.c.h.b16 %v468
    %v1221 = vunpack.c.l.b16 %v469
    %v1222 = vunpack.c.h.b16 %v469
    %v1223 = vunpack.c.l.b16 %v470
    %v1224 = vunpack.c.h.b16 %v470
    %v1225 = vunpack.c.l.b16 %v471
    %v1226 = vunpack.c.h.b16 %v471
    %v1227 = vunpack.c.l.b16 %v472
    %v1228 = vunpack.c.h.b16 %v472
    %v1229 = vunpack.c.l.b16 %v473
    %v1230 = vunpack.c.h.b16 %v473
    %v1231 = vunpack.c.l.b16 %v474
    %v1232 = vunpack.c.h.b16 %v474
    %v1233 = vunpack.c.l.b16 %v475
    %v1234 = vunpack.c.h.b16 %v475
    %v1235 = vunpack.c.l.b16 %v476
    %v1236 = vunpack.c.h.b16 %v476
    %v1237 = vunpack.c.l.b16 %v477
    %v1238 = vunpack.c.h.b16 %v477
    %v1239 = vunpack.c.l.b16 %v478
    %v1240 = vunpack.c.h.b16 %v478
    %v1241 = vunpack.c.l.b16 %v479
    %v1242 = vunpack.c.h.b16 %v479
    %v1243 = vunpack.c.l.b16 %v480
    %v1244 = vunpack.c.h.b16 %v480
    %v1245 = vunpack.c.l.b16 %v481
    %v1246 = vunpack.c.h.b16 %v481
    %v1247 = vunpack.c.l.b16 %v482
    %v1248 = vunpack.c.h.b16 %v482
    %v1249 = vunpack.c.l.b16 %v483
    %v1250 = vunpack.c.h.b16 %v483
    %v1251 = vunpack.c.l.b16 %v484
    %v1252 = vunpack.c.h.b16 %v484
    %v1253 = vunpack.c.l.b16 %v485
    %v1254 = vunpack.c.h.b16 %v485
    %v1255 = vunpack.c.l.b16 %v486
    %v1256 = vunpack.c.h.b16 %v486
    %v1257 = vunpack.c.l.b16 %v487
    %v1258 = vunpack.c.h.b16 %v487
    %v1259 = vunpack.c.l.b16 %v488
    %v1260 = vunpack.c.h.b16 %v488
    %v1261 = vunpack.c.l.b16 %v489
    %v1262 = vunpack.c.h.b16 %v489
    %v1263 = vunpack.c.l.b16 %v490
    %v1264 = vunpack.c.h.b16 %v490
    %v1265 = vunpack.c.l.b16 %v491
    %v1266 = vunpack.c.h.b16 %v491
    %v1267 = vunpack.c.l.b16 %v492
    %v1268 = vunpack.c.h.b16 %v492
    %v1269 = vunpack.c.l.b16 %v493
    %v1270 = vunpack.c.h.b16 %v493
    %v1271 = vunpack.c.l.b16 %v494
    %v1272 = vunpack.c.h.b16 %v494
    %v1273 = vunpack.c.l.b16 %v495
    %v1274 = vunpack.c.h.b16 %v495
    %v1275 = vunpack.c.l.b16 %v496
    %v1276 = vunpack.c.h.b16 %v496
    %v1277 = vunpack.c.l.b16 %v497
    %v1278 = vunpack.c.h.b16 %v497
    %v1279 = vunpack.c.l.b16 %v498
    %v1280 = vunpack.c.h.b16 %v498
    %v1281 = vunpack.c.l.b16 %v499
    %v1282 = vunpack.c.h.b16 %v499
    %v1283 = vunpack.c.l.b16 %v500
    %v1284 = vunpack.c.h.b16 %v500
    %v1285 = vunpack.c.l.b16 %v501
    %v1286 = vunpack.c.h.b16 %v501
    %v1287 = vunpack.c.l.b16 %v502
    %v1288 = vunpack.c.h.b16 %v502
    %v1289 = vunpack.c.l.b16 %v503
    %v1290 = vunpack.c.h.b16 %v503
    %v1291 = vunpack.c.l.b16 %v504
    %v1292 = vunpack.c.h.b16 %v504
    %v1293 = vunpack.c.l.b16 %v505
    %v1294 = vunpack.c.h.b16 %v505
    %v1295 = vunpack.c.l.b16 %v506
    %v1296 = vunpack.c.h.b16 %v506
    %v1297 = vpack.c.b16 %v789, %v785
    %v1298 = vpack.c.b16 %v790, %v786
    %v1299 = vpack.c.b16 %v791, %v787
    %v1300 = vpack.c.b16 %v792, %v788
    %v1301 = vpack.c.b16 %v797, %v793
    %v1302 = vpack.c.b16 %v798, %v794
    %v1303 = vpack.c.b16 %v799, %v795
    %v1304 = vpack.c.b16 %v800, %v796
    %v1305 = vpack.c.b16 %v805, %v801
    %v1306 = vpack.c.b16 %v806, %v802
    %v1307 = vpack.c.b16 %v807, %v803
    %v1308 = vpack.c.b16 %v808, %v804
    %v1309 = vpack.c.b16 %v813, %v809
    %v1310 = vpack.c.b16 %v814, %v810
    %v1311 = vpack.c.b16 %v815, %v811
    %v1312 = vpack.c.b16 %v816, %v812
    %v1313 = vpack.c.b16 %v821, %v817
    %v1314 = vpack.c.b16 %v822, %v818
    %v1315 = vpack.c.b16 %v823, %v819
    %v1316 = vpack.c.b16 %v824, %v820
    %v1317 = vpack.c.b16 %v829, %v825
    %v1318 = vpack.c.b16 %v830, %v826
    %v1319 = vpack.c.b16 %v831, %v827
    %v1320 = vpack.c.b16 %v832, %v828
    %v1321 = vpack.c.b16 %v837, %v833
    %v1322 = vpack.c.b16 %v838, %v834
    %v1323 = vpack.c.b16 %v839, %v835
    %v1324 = vpack.c.b16 %v840, %v836
    %v1325 = vpack.c.b16 %v845, %v841
    %v1326 = vpack.c.b16 %v846, %v842
    %v1327 = vpack.c.b16 %v847, %v843
    %v1328 = vpack.c.b16 %v848, %v844
    %v1329 = vpack.c.b16 %v853, %v849
    %v1330 = vpack.c.b16 %v854, %v850
    %v1331 = vpack.c.b16 %v855, %v851
    %v1332 = vpack.c.b16 %v856, %v852
    %v1333 = vpack.c.b16 %v861, %v857
    %v1334 = vpack.c.b16 %v862, %v858
    %v1335 = vpack.c.b16 %v863, %v859
    %v1336 = vpack.c.b16 %v864, %v860
    %v1337 = vpack.c.b16 %v869, %v865
    %v1338 = vpack.c.b16 %v870, %v866
    %v1339 = vpack.c.b16 %v871, %v867
    %v1340 = vpack.c.b16 %v872, %v868
    %v1341 = vpack.c.b16 %v877, %v873
    %v1342 = vpack.c.b16 %v878, %v874
    %v1343 = vpack.c.b16 %v879, %v875
    %v1344 = vpack.c.b16 %v880, %v876
    %v1345 = vpack.c.b16 %v885, %v881
    %v1346 = vpack.c.b16 %v886, %v882
    %v1347 = vpack.c.b16 %v887, %v883
    %v1348 = vpack.c.b16 %v888, %v884
    %v1349 = vpack.c.b16 %v893, %v889
    %v1350 = vpack.c.b16 %v894, %v890
    %v1351 = vpack.c.b16 %v895, %v891
    %v1352 = vpack.c.b16 %v896, %v892
    %v1353 = vpack.c.b16 %v901, %v897
    %v1354 = vpack.c.b16 %v902, %v898
    %v1355 = vpack.c.b16 %v903, %v899
    %v1356 = vpack.c.b16 %v904, %v900
    %v1357 = vpack.c.b16 %v909, %v905
    %v1358 = vpack.c.b16 %v910, %v906
    %v1359 = vpack.c.b16 %v911, %v907
    %v1360 = vpack.c.b16 %v912, %v908
    %v1361 = vpack.c.b16 %v917, %v913
    %v1362 = vpack.c.b16 %v918, %v914
    %v1363 = vpack.c.b16 %v919, %v915
    %v1364 = vpack.c.b16 %v920, %v916
    %v1365 = vpack.c.b16 %v925, %v921
    %v1366 = vpack.c.b16 %v926, %v922
    %v1367 = vpack.c.b16 %v927, %v923
    %v1368 = vpack.c.b16 %v928, %v924
    %v1369 = vpack.c.b16 %v933, %v929
    %v1370 = vpack.c.b16 %v934, %v930
    %v1371 = vpack.c.b16 %v935, %v931
    %v1372 = vpack.c.b16 %v936, %v932
    %v1373 = vpack.c.b16 %v941, %v937
    %v1374 = vpack.c.b16 %v942, %v938
    %v1375 = vpack.c.b16 %v943, %v939
    %v1376 = vpack.c.b16 %v944, %v940
    %v1377 = vpack.c.b16 %v949, %v945
    %v1378 = vpack.c.b16 %v950, %v946
    %v1379 = vpack.c.b16 %v951, %v947
    %v1380 = vpack.c.b16 %v952, %v948
    %v1381 = vpack.c.b16 %v957, %v953
    %v1382 = vpack.c.b16 %v958, %v954
    %v1383 = vpack.c.b16 %v959, %v955
    %v1384 = vpack.c.b16 %v960, %v956
    %v1385 = vpack.c.b16 %v965, %v961
    %v1386 = vpack.c.b16 %v966, %v962
    %v1387 = vpack.c.b16 %v967, %v963
    %v1388 = vpack.c.b16 %v968, %v964
    %v1389 = vpack.c.b16 %v973, %v969
    %v1390 = vpack.c.b16 %v974, %v970
    %v1391 = vpack.c.b16 %v975, %v971
    %v1392 = vpack.c.b16 %v976, %v972
    %v1393 = vpack.c.b16 %v981, %v977
    %v1394 = vpack.c.b16 %v982, %v978
    %v1395 = vpack.c.b16 %v983, %v979
    %v1396 = vpack.c.b16 %v984, %v980
    %v1397 = vpack.c.b16 %v989, %v985
    %v1398 = vpack.c.b16 %v990, %v986
    %v1399 = vpack.c.b16 %v991, %v987
    %v1400 = vpack.c.b16 %v992, %v988
    %v1401 = vpack.c.b16 %v997, %v993
    %v1402 = vpack.c.b16 %v998, %v994
    %v1403 = vpack.c.b16 %v999, %v995
    %v1404 = vpack.c.b16 %v1000, %v996
    %v1405 = vpack.c.b16 %v1005, %v1001
    %v1406 = vpack.c.b16 %v1006, %v1002
    %v1407 = vpack.c.b16 %v1007, %v1003
    %v1408 = vpack.c.b16 %v1008, %v1004
    %v1409 = vpack.c.b16 %v1013, %v1009
    %v1410 = vpack.c.b16 %v1014, %v1010
    %v1411 = vpack.c.b16 %v1015, %v1011
    %v1412 = vpack.c.b16 %v1016, %v1012
    %v1413 = vpack.c.b16 %v1021, %v1017
    %v1414 = vpack.c.b16 %v1022, %v1018
    %v1415 = vpack.c.b16 %v1023, %v1019
    %v1416 = vpack.c.b16 %v1024, %v1020
    %v1417 = vpack.c.b16 %v1029, %v1025
    %v1418 = vpack.c.b16 %v1030, %v1026
    %v1419 = vpack.c.b16 %v1031, %v1027
    %v1420 = vpack.c.b16 %v1032, %v1028
    %v1421 = vpack.c.b16 %v1037, %v1033
    %v1422 = vpack.c.b16 %v1038, %v1034
    %v1423 = vpack.c.b16 %v1039, %v1035
    %v1424 = vpack.c.b16 %v1040, %v1036
    %v1425 = vpack.c.b16 %v1045, %v1041
    %v1426 = vpack.c.b16 %v1046, %v1042
    %v1427 = vpack.c.b16 %v1047, %v1043
    %v1428 = vpack.c.b16 %v1048, %v1044
    %v1429 = vpack.c.b16 %v1053, %v1049
    %v1430 = vpack.c.b16 %v1054, %v1050
    %v1431 = vpack.c.b16 %v1055, %v1051
    %v1432 = vpack.c.b16 %v1056, %v1052
    %v1433 = vpack.c.b16 %v1061, %v1057
    %v1434 = vpack.c.b16 %v1062, %v1058
    %v1435 = vpack.c.b16 %v1063, %v1059
    %v1436 = vpack.c.b16 %v1064, %v1060
    %v1437 = vpack.c.b16 %v1069, %v1065
    %v1438 = vpack.c.b16 %v1070, %v1066
    %v1439 = vpack.c.b16 %v1071, %v1067
    %v1440 = vpack.c.b16 %v1072, %v1068
    %v1441 = vpack.c.b16 %v1077, %v1073
    %v1442 = vpack.c.b16 %v1078, %v1074
    %v1443 = vpack.c.b16 %v1079, %v1075
    %v1444 = vpack.c.b16 %v1080, %v1076
    %v1445 = vpack.c.b16 %v1085, %v1081
    %v1446 = vpack.c.b16 %v1086, %v1082
    %v1447 = vpack.c.b16 %v1087, %v1083
    %v1448 = vpack.c.b16 %v1088, %v1084
    %v1449 = vpack.c.b16 %v1093, %v1089
    %v1450 = vpack.c.b16 %v1094, %v1090
    %v1451 = vpack.c.b16 %v1095, %v1091
    %v1452 = vpack.c.b16 %v1096, %v1092
    %v1453 = vpack.c.b16 %v1101, %v1097
    %v1454 = vpack.c.b16 %v1102, %v1098
    %v1455 = vpack.c.b16 %v1103, %v1099
    %v1456 = vpack.c.b16 %v1104, %v1100
    %v1457 = vpack.c.b16 %v1109, %v1105
    %v1458 = vpack.c.b16 %v1110, %v1106
    %v1459 = vpack.c.b16 %v1111, %v1107
    %v1460 = vpack.c.b16 %v1112, %v1108
    %v1461 = vpack.c.b16 %v1117, %v1113
    %v1462 = vpack.c.b16 %v1118, %v1114
    %v1463 = vpack.c.b16 %v1119, %v1115
    %v1464 = vpack.c.b16 %v1120, %v1116
    %v1465 = vpack.c.b16 %v1125, %v1121
    %v1466 = vpack.c.b16 %v1126, %v1122
    %v1467 = vpack.c.b16 %v1127, %v1123
    %v1468 = vpack.c.b16 %v1128, %v1124
    %v1469 = vpack.c.b16 %v1133, %v1129
    %v1470 = vpack.c.b16 %v1134, %v1130
    %v1471 = vpack.c.b16 %v1135, %v1131
    %v1472 = vpack.c.b16 %v1136, %v1132
    %v1473 = vpack.c.b16 %v1141, %v1137
    %v1474 = vpack.c.b16 %v1142, %v1138
    %v1475 = vpack.c.b16 %v1143, %v1139
    %v1476 = vpack.c.b16 %v1144, %v1140
    %v1477 = vpack.c.b16 %v1149, %v1145
    %v1478 = vpack.c.b16 %v1150, %v1146
    %v1479 = vpack.c.b16 %v1151, %v1147
    %v1480 = vpack.c.b16 %v1152, %v1148
    %v1481 = vpack.c.b16 %v1157, %v1153
    %v1482 = vpack.c.b16 %v1158, %v1154
    %v1483 = vpack.c.b16 %v1159, %v1155
    %v1484 = vpack.c.b16 %v1160, %v1156
    %v1485 = vpack.c.b16 %v1165, %v1161
    %v1486 = vpack.c.b16 %v1166, %v1162
    %v1487 = vpack.c.b16 %v1167, %v1163
    %v1488 = vpack.c.b16 %v1168, %v1164
    %v1489 = vpack.c.b16 %v1173, %v1169
    %v1490 = vpack.c.b16 %v1174, %v1170
    %v1491 = vpack.c.b16 %v1175, %v1171
    %v1492 = vpack.c.b16 %v1176, %v1172
    %v1493 = vpack.c.b16 %v1181, %v1177
    %v1494 = vpack.c.b16 %v1182, %v1178
    %v1495 = vpack.c.b16 %v1183, %v1179
    %v1496 = vpack.c.b16 %v1184, %v1180
    %v1497 = vpack.c.b16 %v1189, %v1185
    %v1498 = vpack.c.b16 %v1190, %v1186
    %v1499 = vpack.c.b16 %v1191, %v1187
    %v1500 = vpack.c.b16 %v1192, %v1188
    %v1501 = vpack.c.b16 %v1197, %v1193
    %v1502 = vpack.c.b16 %v1198, %v1194
    %v1503 = vpack.c.b16 %v1199, %v1195
    %v1504 = vpack.c.b16 %v1200, %v1196
    %v1505 = vpack.c.b16 %v1205, %v1201
    %v1506 = vpack.c.b16 %v1206, %v1202
    %v1507 = vpack.c.b16 %v1207, %v1203
    %v1508 = vpack.c.b16 %v1208, %v1204
    %v1509 = vpack.c.b16 %v1213, %v1209
    %v1510 = vpack.c.b16 %v1214, %v1210
    %v1511 = vpack.c.b16 %v1215, %v1211
    %v1512 = vpack.c.b16 %v1216, %v1212
    %v1513 = vpack.c.b16 %v1221, %v1217
    %v1514 = vpack.c.b16 %v1222, %v1218
    %v1515 = vpack.c.b16 %v1223, %v1219
    %v1516 = vpack.c.b16 %v1224, %v1220
    %v1517 = vpack.c.b16 %v1229, %v1225
    %v1518 = vpack.c.b16 %v1230, %v1226
    %v1519 = vpack.c.b16 %v1231, %v1227
    %v1520 = vpack.c.b16 %v1232, %v1228
    %v1521 = vpack.c.b16 %v1237, %v1233
    %v1522 = vpack.c.b16 %v1238, %v1234
    %v1523 = vpack.c.b16 %v1239, %v1235
    %v1524 = vpack.c.b16 %v1240, %v1236
    %v1525 = vpack.c.b16 %v1245, %v1241
    %v1526 = vpack.c.b16 %v1246, %v1242
    %v1527 = vpack.c.b16 %v1247, %v1243
    %v1528 = vpack.c.b16 %v1248, %v1244
    %v1529 = vpack.c.b16 %v1253, %v1249
    %v1530 = vpack.c.b16 %v1254, %v1250
    %v1531 = vpack.c.b16 %v1255, %v1251
    %v1532 = vpack.c.b16 %v1256, %v1252
    %v1533 = vpack.c.b16 %v1261, %v1257
    %v1534 = vpack.c.b16 %v1262, %v1258
    %v1535 = vpack.c.b16 %v1263, %v1259
    %v1536 = vpack.c.b16 %v1264, %v1260
    %v1537 = vpack.c.b16 %v1269, %v1265
    %v1538 = vpack.c.b16 %v1270, %v1266
    %v1539 = vpack.c.b16 %v1271, %v1267
    %v1540 = vpack.c.b16 %v1272, %v1268
    %v1541 = vpack.c.b16 %v1277, %v1273
    %v1542 = vpack.c.b16 %v1278, %v1274
    %v1543 = vpack.c.b16 %v1279, %v1275
    %v1544 = vpack.c.b16 %v1280, %v1276
    %v1545 = vpack.c.b16 %v1285, %v1281
    %v1546 = vpack.c.b16 %v1286, %v1282
    %v1547 = vpack.c.b16 %v1287, %v1283
    %v1548 = vpack.c.b16 %v1288, %v1284
    %v1549 = vpack.c.b16 %v1293, %v1289
    %v1550 = vpack.c.b16 %v1294, %v1290
    %v1551 = vpack.c.b16 %v1295, %v1291
    %v1552 = vpack.c.b16 %v1296, %v1292
    %1809 = vmatprep.subr.bf16.mxu0 %v1298
    %1810 = vmatpush1.bf16.msra.mxu0 %v1297
    %1811 = vmatprep.subr.bf16.mxu0 %v1302
    %1812 = vmatpush1.bf16.msra.mxu0 %v1301
    %1813 = vmatprep.subr.bf16.mxu0 %v1306
    %1814 = vmatpush1.bf16.msra.mxu0 %v1305
    %1815 = vmatprep.subr.bf16.mxu0 %v1310
    %1816 = vmatpush1.bf16.msra.mxu0 %v1309
    %1817 = vmatprep.subr.bf16.mxu0 %v1314
    %1818 = vmatpush1.bf16.msra.mxu0 %v1313
    %1819 = vmatprep.subr.bf16.mxu0 %v1318
    %1820 = vmatpush1.bf16.msra.mxu0 %v1317
    %1821 = vmatprep.subr.bf16.mxu0 %v1322
    %1822 = vmatpush1.bf16.msra.mxu0 %v1321
    %1823 = vmatprep.subr.bf16.mxu0 %v1326
    %1824 = vmatpush1.bf16.msra.mxu0 %v1325
    %1825 = vmatprep.subr.bf16.mxu0 %v1330
    %1826 = vmatpush1.bf16.msra.mxu0 %v1329
    %1827 = vmatprep.subr.bf16.mxu0 %v1334
    %1828 = vmatpush1.bf16.msra.mxu0 %v1333
    %1829 = vmatprep.subr.bf16.mxu0 %v1338
    %1830 = vmatpush1.bf16.msra.mxu0 %v1337
    %1831 = vmatprep.subr.bf16.mxu0 %v1342
    %1832 = vmatpush1.bf16.msra.mxu0 %v1341
    %1833 = vmatprep.subr.bf16.mxu0 %v1346
    %1834 = vmatpush1.bf16.msra.mxu0 %v1345
    %1835 = vmatprep.subr.bf16.mxu0 %v1350
    %1836 = vmatpush1.bf16.msra.mxu0 %v1349
    %1837 = vmatprep.subr.bf16.mxu0 %v1354
    %1838 = vmatpush1.bf16.msra.mxu0 %v1353
    %1839 = vmatprep.subr.bf16.mxu0 %v1358
    %1840 = vmatpush1.bf16.msra.mxu0 %v1357
    %1841 = vmatprep.mubr.bf16.mxu0 %v220
    %1842 = vmatmul.mubr.bf16.gmra.mrb[0].mxu0 %v219
    %v1843 = vpop.f32.mrb[0].mxu0
    %v1844 = vadd.f32 %v512, %v1843
    %v1845 = vpop.f32.mrb[0].mxu0
    %v1846 = vadd.f32 %v516, %v1845
    %v1847 = vpop.f32.mrb[0].mxu0
    %v1848 = vadd.f32 %v512, %v1847
    %v1849 = vpop.f32.mrb[0].mxu0
    %v1850 = vadd.f32 %v516, %v1849
    %1851 = vmatprep.mubr.bf16.mxu0 %v228
    %1852 = vmatmul.mubr.bf16.gmra.mrb[0].mxu0 %v227
    %v1853 = vpop.f32.mrb[0].mxu0
    %v1854 = vadd.f32 %v512, %v1853
    %v1855 = vpop.f32.mrb[0].mxu0
    %v1856 = vadd.f32 %v516, %v1855
    %v1857 = vpop.f32.mrb[0].mxu0
    %v1858 = vadd.f32 %v512, %v1857
    %v1859 = vpop.f32.mrb[0].mxu0
    %v1860 = vadd.f32 %v516, %v1859
    %1861 = vmatprep.mubr.bf16.mxu0 %v236
    %1862 = vmatmul.mubr.bf16.gmra.mrb[0].mxu0 %v235
    %v1863 = vpop.f32.mrb[0].mxu0
    %v1864 = vadd.f32 %v512, %v1863
    %v1865 = vpop.f32.mrb[0].mxu0
    %v1866 = vadd.f32 %v516, %v1865
    %v1867 = vpop.f32.mrb[0].mxu0
    %v1868 = vadd.f32 %v512, %v1867
    %v1869 = vpop.f32.mrb[0].mxu0
    %v1870 = vadd.f32 %v516, %v1869
    %1871 = vmatprep.mubr.bf16.mxu0 %v244
    %1872 = vmatmul.mubr.bf16.gmra.mrb[0].mxu0 %v243
    %v1873 = vpop.f32.mrb[0].mxu0
    %v1874 = vadd.f32 %v512, %v1873
    %v1875 = vpop.f32.mrb[0].mxu0
    %v1876 = vadd.f32 %v516, %v1875
    %v1877 = vpop.f32.mrb[0].mxu0
    %v1878 = vadd.f32 %v512, %v1877
    %v1879 = vpop.f32.mrb[0].mxu0
    %v1880 = vadd.f32 %v516, %v1879
    %1881 = vdwg.mxu0
    %1882 = vmatprep.subr.bf16.mxu0 %v1362
    %1883 = vmatpush1.bf16.msra.mxu0 %v1361
    %1884 = vmatprep.subr.bf16.mxu0 %v1366
    %1885 = vmatpush1.bf16.msra.mxu0 %v1365
    %1886 = vmatprep.subr.bf16.mxu0 %v1370
    %1887 = vmatpush1.bf16.msra.mxu0 %v1369
    %1888 = vmatprep.subr.bf16.mxu0 %v1374
    %1889 = vmatpush1.bf16.msra.mxu0 %v1373
    %1890 = vmatprep.subr.bf16.mxu0 %v1378
    %1891 = vmatpush1.bf16.msra.mxu0 %v1377
    %1892 = vmatprep.subr.bf16.mxu0 %v1382
    %1893 = vmatpush1.bf16.msra.mxu0 %v1381
    %1894 = vmatprep.subr.bf16.mxu0 %v1386
    %1895 = vmatpush1.bf16.msra.mxu0 %v1385
    %1896 = vmatprep.subr.bf16.mxu0 %v1390
    %1897 = vmatpush1.bf16.msra.mxu0 %v1389
    %1898 = vmatprep.subr.bf16.mxu0 %v1394
    %1899 = vmatpush1.bf16.msra.mxu0 %v1393
    %1900 = vmatprep.subr.bf16.mxu0 %v1398
    %1901 = vmatpush1.bf16.msra.mxu0 %v1397
    %1902 = vmatprep.subr.bf16.mxu0 %v1402
    %1903 = vmatpush1.bf16.msra.mxu0 %v1401
    %1904 = vmatprep.subr.bf16.mxu0 %v1406
    %1905 = vmatpush1.bf16.msra.mxu0 %v1405
    %1906 = vmatprep.subr.bf16.mxu0 %v1410
    %1907 = vmatpush1.bf16.msra.mxu0 %v1409
    %1908 = vmatprep.subr.bf16.mxu0 %v1414
    %1909 = vmatpush1.bf16.msra.mxu0 %v1413
    %1910 = vmatprep.subr.bf16.mxu0 %v1418
    %1911 = vmatpush1.bf16.msra.mxu0 %v1417
    %1912 = vmatprep.subr.bf16.mxu0 %v1422
    %1913 = vmatpush1.bf16.msra.mxu0 %v1421
    %1914 = vmatprep.mubr.bf16.mxu0 %v222
    %1915 = vmatmul.mubr.bf16.gmra.mrb[0].mxu0 %v221
    %v1916 = vpop.f32.mrb[0].mxu0
    %v1917 = vadd.f32 %v1844, %v1916
    %v1918 = vpop.f32.mrb[0].mxu0
    %v1919 = vadd.f32 %v1846, %v1918
    %v1920 = vpop.f32.mrb[0].mxu0
    %v1921 = vadd.f32 %v1848, %v1920
    %v1922 = vpop.f32.mrb[0].mxu0
    %v1923 = vadd.f32 %v1850, %v1922
    %1924 = vmatprep.mubr.bf16.mxu0 %v230
    %1925 = vmatmul.mubr.bf16.gmra.mrb[0].mxu0 %v229
    %v1926 = vpop.f32.mrb[0].mxu0
    %v1927 = vadd.f32 %v1854, %v1926
    %v1928 = vpop.f32.mrb[0].mxu0
    %v1929 = vadd.f32 %v1856, %v1928
    %v1930 = vpop.f32.mrb[0].mxu0
    %v1931 = vadd.f32 %v1858, %v1930
    %v1932 = vpop.f32.mrb[0].mxu0
    %v1933 = vadd.f32 %v1860, %v1932
    %1934 = vmatprep.mubr.bf16.mxu0 %v238
    %1935 = vmatmul.mubr.bf16.gmra.mrb[0].mxu0 %v237
    %v1936 = vpop.f32.mrb[0].mxu0
    %v1937 = vadd.f32 %v1864, %v1936
    %v1938 = vpop.f32.mrb[0].mxu0
    %v1939 = vadd.f32 %v1866, %v1938
    %v1940 = vpop.f32.mrb[0].mxu0
    %v1941 = vadd.f32 %v1868, %v1940
    %v1942 = vpop.f32.mrb[0].mxu0
    %v1943 = vadd.f32 %v1870, %v1942
    %1944 = vmatprep.mubr.bf16.mxu0 %v246
    %1945 = vmatmul.mubr.bf16.gmra.mrb[0].mxu0 %v245
    %v1946 = vpop.f32.mrb[0].mxu0
    %v1947 = vadd.f32 %v1874, %v1946
    %v1948 = vpop.f32.mrb[0].mxu0
    %v1949 = vadd.f32 %v1876, %v1948
    %v1950 = vpop.f32.mrb[0].mxu0
    %v1951 = vadd.f32 %v1878, %v1950
    %v1952 = vpop.f32.mrb[0].mxu0
    %v1953 = vadd.f32 %v1880, %v1952
    %1954 = vdwg.mxu0
    %1955 = vmatprep.subr.bf16.mxu0 %v1426
    %1956 = vmatpush1.bf16.msra.mxu0 %v1425
    %1957 = vmatprep.subr.bf16.mxu0 %v1430
    %1958 = vmatpush1.bf16.msra.mxu0 %v1429
    %1959 = vmatprep.subr.bf16.mxu0 %v1434
    %1960 = vmatpush1.bf16.msra.mxu0 %v1433
    %1961 = vmatprep.subr.bf16.mxu0 %v1438
    %1962 = vmatpush1.bf16.msra.mxu0 %v1437
    %1963 = vmatprep.subr.bf16.mxu0 %v1442
    %1964 = vmatpush1.bf16.msra.mxu0 %v1441
    %1965 = vmatprep.subr.bf16.mxu0 %v1446
    %1966 = vmatpush1.bf16.msra.mxu0 %v1445
    %1967 = vmatprep.subr.bf16.mxu0 %v1450
    %1968 = vmatpush1.bf16.msra.mxu0 %v1449
    %1969 = vmatprep.subr.bf16.mxu0 %v1454
    %1970 = vmatpush1.bf16.msra.mxu0 %v1453
    %1971 = vmatprep.subr.bf16.mxu0 %v1458
    %1972 = vmatpush1.bf16.msra.mxu0 %v1457
    %1973 = vmatprep.subr.bf16.mxu0 %v1462
    %1974 = vmatpush1.bf16.msra.mxu0 %v1461
    %1975 = vmatprep.subr.bf16.mxu0 %v1466
    %1976 = vmatpush1.bf16.msra.mxu0 %v1465
    %1977 = vmatprep.subr.bf16.mxu0 %v1470
    %1978 = vmatpush1.bf16.msra.mxu0 %v1469
    %1979 = vmatprep.subr.bf16.mxu0 %v1474
    %1980 = vmatpush1.bf16.msra.mxu0 %v1473
    %1981 = vmatprep.subr.bf16.mxu0 %v1478
    %1982 = vmatpush1.bf16.msra.mxu0 %v1477
    %1983 = vmatprep.subr.bf16.mxu0 %v1482
    %1984 = vmatpush1.bf16.msra.mxu0 %v1481
    %1985 = vmatprep.subr.bf16.mxu0 %v1486
    %1986 = vmatpush1.bf16.msra.mxu0 %v1485
    %1987 = vmatprep.mubr.bf16.mxu0 %v224
    %1988 = vmatmul.mubr.bf16.gmra.mrb[0].mxu0 %v223
    %v1989 = vpop.f32.mrb[0].mxu0
    %v1990 = vadd.f32 %v1917, %v1989
    %v1991 = vpop.f32.mrb[0].mxu0
    %v1992 = vadd.f32 %v1919, %v1991
    %v1993 = vpop.f32.mrb[0].mxu0
    %v1994 = vadd.f32 %v1921, %v1993
    %v1995 = vpop.f32.mrb[0].mxu0
    %v1996 = vadd.f32 %v1923, %v1995
    %1997 = vmatprep.mubr.bf16.mxu0 %v232
    %1998 = vmatmul.mubr.bf16.gmra.mrb[0].mxu0 %v231
    %v1999 = vpop.f32.mrb[0].mxu0
    %v2000 = vadd.f32 %v1927, %v1999
    %v2001 = vpop.f32.mrb[0].mxu0
    %v2002 = vadd.f32 %v1929, %v2001
    %v2003 = vpop.f32.mrb[0].mxu0
    %v2004 = vadd.f32 %v1931, %v2003
    %v2005 = vpop.f32.mrb[0].mxu0
    %v2006 = vadd.f32 %v1933, %v2005
    %2007 = vmatprep.mubr.bf16.mxu0 %v240
    %2008 = vmatmul.mubr.bf16.gmra.mrb[0].mxu0 %v239
    %v2009 = vpop.f32.mrb[0].mxu0
    %v2010 = vadd.f32 %v1937, %v2009
    %v2011 = vpop.f32.mrb[0].mxu0
    %v2012 = vadd.f32 %v1939, %v2011
    %v2013 = vpop.f32.mrb[0].mxu0
    %v2014 = vadd.f32 %v1941, %v2013
    %v2015 = vpop.f32.mrb[0].mxu0
    %v2016 = vadd.f32 %v1943, %v2015
    %2017 = vmatprep.mubr.bf16.mxu0 %v248
    %2018 = vmatmul.mubr.bf16.gmra.mrb[0].mxu0 %v247
    %v2019 = vpop.f32.mrb[0].mxu0
    %v2020 = vadd.f32 %v1947, %v2019
    %v2021 = vpop.f32.mrb[0].mxu0
    %v2022 = vadd.f32 %v1949, %v2021
    %v2023 = vpop.f32.mrb[0].mxu0
    %v2024 = vadd.f32 %v1951, %v2023
    %v2025 = vpop.f32.mrb[0].mxu0
    %v2026 = vadd.f32 %v1953, %v2025
    %2027 = vdwg.mxu0
    %2028 = vmatprep.subr.bf16.mxu0 %v1490
    %2029 = vmatpush1.bf16.msra.mxu0 %v1489
    %2030 = vmatprep.subr.bf16.mxu0 %v1494
    %2031 = vmatpush1.bf16.msra.mxu0 %v1493
    %2032 = vmatprep.subr.bf16.mxu0 %v1498
    %2033 = vmatpush1.bf16.msra.mxu0 %v1497
    %2034 = vmatprep.subr.bf16.mxu0 %v1502
    %2035 = vmatpush1.bf16.msra.mxu0 %v1501
    %2036 = vmatprep.subr.bf16.mxu0 %v1506
    %2037 = vmatpush1.bf16.msra.mxu0 %v1505
    %2038 = vmatprep.subr.bf16.mxu0 %v1510
    %2039 = vmatpush1.bf16.msra.mxu0 %v1509
    %2040 = vmatprep.subr.bf16.mxu0 %v1514
    %2041 = vmatpush1.bf16.msra.mxu0 %v1513
    %2042 = vmatprep.subr.bf16.mxu0 %v1518
    %2043 = vmatpush1.bf16.msra.mxu0 %v1517
    %2044 = vmatprep.subr.bf16.mxu0 %v1522
    %2045 = vmatpush1.bf16.msra.mxu0 %v1521
    %2046 = vmatprep.subr.bf16.mxu0 %v1526
    %2047 = vmatpush1.bf16.msra.mxu0 %v1525
    %2048 = vmatprep.subr.bf16.mxu0 %v1530
    %2049 = vmatpush1.bf16.msra.mxu0 %v1529
    %2050 = vmatprep.subr.bf16.mxu0 %v1534
    %2051 = vmatpush1.bf16.msra.mxu0 %v1533
    %2052 = vmatprep.subr.bf16.mxu0 %v1538
    %2053 = vmatpush1.bf16.msra.mxu0 %v1537
    %2054 = vmatprep.subr.bf16.mxu0 %v1542
    %2055 = vmatpush1.bf16.msra.mxu0 %v1541
    %2056 = vmatprep.subr.bf16.mxu0 %v1546
    %2057 = vmatpush1.bf16.msra.mxu0 %v1545
    %2058 = vmatprep.subr.bf16.mxu0 %v1550
    %2059 = vmatpush1.bf16.msra.mxu0 %v1549
    %2060 = vmatprep.mubr.bf16.mxu0 %v226
    %2061 = vmatmul.mubr.bf16.gmra.mrb[0].mxu0 %v225
    %v2062 = vpop.f32.mrb[0].mxu0
    %v2063 = vadd.f32 %v1990, %v2062
    %v2064 = vpop.f32.mrb[0].mxu0
    %v2065 = vadd.f32 %v1992, %v2064
    %v2066 = vpop.f32.mrb[0].mxu0
    %v2067 = vadd.f32 %v1994, %v2066
    %v2068 = vpop.f32.mrb[0].mxu0
    %v2069 = vadd.f32 %v1996, %v2068
    %2070 = vmatprep.mubr.bf16.mxu0 %v234
    %2071 = vmatmul.mubr.bf16.gmra.mrb[0].mxu0 %v233
    %v2072 = vpop.f32.mrb[0].mxu0
    %v2073 = vadd.f32 %v2000, %v2072
    %v2074 = vpop.f32.mrb[0].mxu0
    %v2075 = vadd.f32 %v2002, %v2074
    %v2076 = vpop.f32.mrb[0].mxu0
    %v2077 = vadd.f32 %v2004, %v2076
    %v2078 = vpop.f32.mrb[0].mxu0
    %v2079 = vadd.f32 %v2006, %v2078
    %2080 = vmatprep.mubr.bf16.mxu0 %v242
    %2081 = vmatmul.mubr.bf16.gmra.mrb[0].mxu0 %v241
    %v2082 = vpop.f32.mrb[0].mxu0
    %v2083 = vadd.f32 %v2010, %v2082
    %v2084 = vpop.f32.mrb[0].mxu0
    %v2085 = vadd.f32 %v2012, %v2084
    %v2086 = vpop.f32.mrb[0].mxu0
    %v2087 = vadd.f32 %v2014, %v2086
    %v2088 = vpop.f32.mrb[0].mxu0
    %v2089 = vadd.f32 %v2016, %v2088
    %2090 = vmatprep.mubr.bf16.mxu0 %v250
    %2091 = vmatmul.mubr.bf16.gmra.mrb[0].mxu0 %v249
    %v2092 = vpop.f32.mrb[0].mxu0
    %v2093 = vadd.f32 %v2020, %v2092
    %v2094 = vpop.f32.mrb[0].mxu0
    %v2095 = vadd.f32 %v2022, %v2094
    %v2096 = vpop.f32.mrb[0].mxu0
    %v2097 = vadd.f32 %v2024, %v2096
    %v2098 = vpop.f32.mrb[0].mxu0
    %v2099 = vadd.f32 %v2026, %v2098
    %2100 = vdwg.mxu0
    %2101 = vmatprep.subr.bf16.mxu0 %v1300
    %2102 = vmatpush1.bf16.msra.mxu0 %v1299
    %2103 = vmatprep.subr.bf16.mxu0 %v1304
    %2104 = vmatpush1.bf16.msra.mxu0 %v1303
    %2105 = vmatprep.subr.bf16.mxu0 %v1308
    %2106 = vmatpush1.bf16.msra.mxu0 %v1307
    %2107 = vmatprep.subr.bf16.mxu0 %v1312
    %2108 = vmatpush1.bf16.msra.mxu0 %v1311
    %2109 = vmatprep.subr.bf16.mxu0 %v1316
    %2110 = vmatpush1.bf16.msra.mxu0 %v1315
    %2111 = vmatprep.subr.bf16.mxu0 %v1320
    %2112 = vmatpush1.bf16.msra.mxu0 %v1319
    %2113 = vmatprep.subr.bf16.mxu0 %v1324
    %2114 = vmatpush1.bf16.msra.mxu0 %v1323
    %2115 = vmatprep.subr.bf16.mxu0 %v1328
    %2116 = vmatpush1.bf16.msra.mxu0 %v1327
    %2117 = vmatprep.subr.bf16.mxu0 %v1332
    %2118 = vmatpush1.bf16.msra.mxu0 %v1331
    %2119 = vmatprep.subr.bf16.mxu0 %v1336
    %2120 = vmatpush1.bf16.msra.mxu0 %v1335
    %2121 = vmatprep.subr.bf16.mxu0 %v1340
    %2122 = vmatpush1.bf16.msra.mxu0 %v1339
    %2123 = vmatprep.subr.bf16.mxu0 %v1344
    %2124 = vmatpush1.bf16.msra.mxu0 %v1343
    %2125 = vmatprep.subr.bf16.mxu0 %v1348
    %2126 = vmatpush1.bf16.msra.mxu0 %v1347
    %2127 = vmatprep.subr.bf16.mxu0 %v1352
    %2128 = vmatpush1.bf16.msra.mxu0 %v1351
    %2129 = vmatprep.subr.bf16.mxu0 %v1356
    %2130 = vmatpush1.bf16.msra.mxu0 %v1355
    %2131 = vmatprep.subr.bf16.mxu0 %v1360
    %2132 = vmatpush1.bf16.msra.mxu0 %v1359
    %2133 = vmatprep.mubr.bf16.mxu0 %v220
    %2134 = vmatmul.mubr.bf16.gmra.mrb[0].mxu0 %v219
    %v2135 = vpop.f32.mrb[0].mxu0
    %v2136 = vadd.f32 %v520, %v2135
    %v2137 = vpop.f32.mrb[0].mxu0
    %v2138 = vadd.f32 %v524, %v2137
    %v2139 = vpop.f32.mrb[0].mxu0
    %v2140 = vadd.f32 %v520, %v2139
    %v2141 = vpop.f32.mrb[0].mxu0
    %v2142 = vadd.f32 %v524, %v2141
    %2143 = vmatprep.mubr.bf16.mxu0 %v228
    %2144 = vmatmul.mubr.bf16.gmra.mrb[0].mxu0 %v227
    %v2145 = vpop.f32.mrb[0].mxu0
    %v2146 = vadd.f32 %v520, %v2145
    %v2147 = vpop.f32.mrb[0].mxu0
    %v2148 = vadd.f32 %v524, %v2147
    %v2149 = vpop.f32.mrb[0].mxu0
    %v2150 = vadd.f32 %v520, %v2149
    %v2151 = vpop.f32.mrb[0].mxu0
    %v2152 = vadd.f32 %v524, %v2151
    %2153 = vmatprep.mubr.bf16.mxu0 %v236
    %2154 = vmatmul.mubr.bf16.gmra.mrb[0].mxu0 %v235
    %v2155 = vpop.f32.mrb[0].mxu0
    %v2156 = vadd.f32 %v520, %v2155
    %v2157 = vpop.f32.mrb[0].mxu0
    %v2158 = vadd.f32 %v524, %v2157
    %v2159 = vpop.f32.mrb[0].mxu0
    %v2160 = vadd.f32 %v520, %v2159
    %v2161 = vpop.f32.mrb[0].mxu0
    %v2162 = vadd.f32 %v524, %v2161
    %2163 = vmatprep.mubr.bf16.mxu0 %v244
    %2164 = vmatmul.mubr.bf16.gmra.mrb[0].mxu0 %v243
    %v2165 = vpop.f32.mrb[0].mxu0
    %v2166 = vadd.f32 %v520, %v2165
    %v2167 = vpop.f32.mrb[0].mxu0
    %v2168 = vadd.f32 %v524, %v2167
    %v2169 = vpop.f32.mrb[0].mxu0
    %v2170 = vadd.f32 %v520, %v2169
    %v2171 = vpop.f32.mrb[0].mxu0
    %v2172 = vadd.f32 %v524, %v2171
    %2173 = vdwg.mxu0
    %2174 = vmatprep.subr.bf16.mxu0 %v1364
    %2175 = vmatpush1.bf16.msra.mxu0 %v1363
    %2176 = vmatprep.subr.bf16.mxu0 %v1368
    %2177 = vmatpush1.bf16.msra.mxu0 %v1367
    %2178 = vmatprep.subr.bf16.mxu0 %v1372
    %2179 = vmatpush1.bf16.msra.mxu0 %v1371
    %2180 = vmatprep.subr.bf16.mxu0 %v1376
    %2181 = vmatpush1.bf16.msra.mxu0 %v1375
    %2182 = vmatprep.subr.bf16.mxu0 %v1380
    %2183 = vmatpush1.bf16.msra.mxu0 %v1379
    %2184 = vmatprep.subr.bf16.mxu0 %v1384
    %2185 = vmatpush1.bf16.msra.mxu0 %v1383
    %2186 = vmatprep.subr.bf16.mxu0 %v1388
    %2187 = vmatpush1.bf16.msra.mxu0 %v1387
    %2188 = vmatprep.subr.bf16.mxu0 %v1392
    %2189 = vmatpush1.bf16.msra.mxu0 %v1391
    %2190 = vmatprep.subr.bf16.mxu0 %v1396
    %2191 = vmatpush1.bf16.msra.mxu0 %v1395
    %2192 = vmatprep.subr.bf16.mxu0 %v1400
    %2193 = vmatpush1.bf16.msra.mxu0 %v1399
    %2194 = vmatprep.subr.bf16.mxu0 %v1404
    %2195 = vmatpush1.bf16.msra.mxu0 %v1403
    %2196 = vmatprep.subr.bf16.mxu0 %v1408
    %2197 = vmatpush1.bf16.msra.mxu0 %v1407
    %2198 = vmatprep.subr.bf16.mxu0 %v1412
    %2199 = vmatpush1.bf16.msra.mxu0 %v1411
    %2200 = vmatprep.subr.bf16.mxu0 %v1416
    %2201 = vmatpush1.bf16.msra.mxu0 %v1415
    %2202 = vmatprep.subr.bf16.mxu0 %v1420
    %2203 = vmatpush1.bf16.msra.mxu0 %v1419
    %2204 = vmatprep.subr.bf16.mxu0 %v1424
    %2205 = vmatpush1.bf16.msra.mxu0 %v1423
    %2206 = vmatprep.mubr.bf16.mxu0 %v222
    %2207 = vmatmul.mubr.bf16.gmra.mrb[0].mxu0 %v221
    %v2208 = vpop.f32.mrb[0].mxu0
    %v2209 = vadd.f32 %v2136, %v2208
    %v2210 = vpop.f32.mrb[0].mxu0
    %v2211 = vadd.f32 %v2138, %v2210
    %v2212 = vpop.f32.mrb[0].mxu0
    %v2213 = vadd.f32 %v2140, %v2212
    %v2214 = vpop.f32.mrb[0].mxu0
    %v2215 = vadd.f32 %v2142, %v2214
    %2216 = vmatprep.mubr.bf16.mxu0 %v230
    %2217 = vmatmul.mubr.bf16.gmra.mrb[0].mxu0 %v229
    %v2218 = vpop.f32.mrb[0].mxu0
    %v2219 = vadd.f32 %v2146, %v2218
    %v2220 = vpop.f32.mrb[0].mxu0
    %v2221 = vadd.f32 %v2148, %v2220
    %v2222 = vpop.f32.mrb[0].mxu0
    %v2223 = vadd.f32 %v2150, %v2222
    %v2224 = vpop.f32.mrb[0].mxu0
    %v2225 = vadd.f32 %v2152, %v2224
    %2226 = vmatprep.mubr.bf16.mxu0 %v238
    %2227 = vmatmul.mubr.bf16.gmra.mrb[0].mxu0 %v237
    %v2228 = vpop.f32.mrb[0].mxu0
    %v2229 = vadd.f32 %v2156, %v2228
    %v2230 = vpop.f32.mrb[0].mxu0
    %v2231 = vadd.f32 %v2158, %v2230
    %v2232 = vpop.f32.mrb[0].mxu0
    %v2233 = vadd.f32 %v2160, %v2232
    %v2234 = vpop.f32.mrb[0].mxu0
    %v2235 = vadd.f32 %v2162, %v2234
    %2236 = vmatprep.mubr.bf16.mxu0 %v246
    %2237 = vmatmul.mubr.bf16.gmra.mrb[0].mxu0 %v245
    %v2238 = vpop.f32.mrb[0].mxu0
    %v2239 = vadd.f32 %v2166, %v2238
    %v2240 = vpop.f32.mrb[0].mxu0
    %v2241 = vadd.f32 %v2168, %v2240
    %v2242 = vpop.f32.mrb[0].mxu0
    %v2243 = vadd.f32 %v2170, %v2242
    %v2244 = vpop.f32.mrb[0].mxu0
    %v2245 = vadd.f32 %v2172, %v2244
    %2246 = vdwg.mxu0
    %2247 = vmatprep.subr.bf16.mxu0 %v1428
    %2248 = vmatpush1.bf16.msra.mxu0 %v1427
    %2249 = vmatprep.subr.bf16.mxu0 %v1432
    %2250 = vmatpush1.bf16.msra.mxu0 %v1431
    %2251 = vmatprep.subr.bf16.mxu0 %v1436
    %2252 = vmatpush1.bf16.msra.mxu0 %v1435
    %2253 = vmatprep.subr.bf16.mxu0 %v1440
    %2254 = vmatpush1.bf16.msra.mxu0 %v1439
    %2255 = vmatprep.subr.bf16.mxu0 %v1444
    %2256 = vmatpush1.bf16.msra.mxu0 %v1443
    %2257 = vmatprep.subr.bf16.mxu0 %v1448
    %2258 = vmatpush1.bf16.msra.mxu0 %v1447
    %2259 = vmatprep.subr.bf16.mxu0 %v1452
    %2260 = vmatpush1.bf16.msra.mxu0 %v1451
    %2261 = vmatprep.subr.bf16.mxu0 %v1456
    %2262 = vmatpush1.bf16.msra.mxu0 %v1455
    %2263 = vmatprep.subr.bf16.mxu0 %v1460
    %2264 = vmatpush1.bf16.msra.mxu0 %v1459
    %2265 = vmatprep.subr.bf16.mxu0 %v1464
    %2266 = vmatpush1.bf16.msra.mxu0 %v1463
    %2267 = vmatprep.subr.bf16.mxu0 %v1468
    %2268 = vmatpush1.bf16.msra.mxu0 %v1467
    %2269 = vmatprep.subr.bf16.mxu0 %v1472
    %2270 = vmatpush1.bf16.msra.mxu0 %v1471
    %2271 = vmatprep.subr.bf16.mxu0 %v1476
    %2272 = vmatpush1.bf16.msra.mxu0 %v1475
    %2273 = vmatprep.subr.bf16.mxu0 %v1480
    %2274 = vmatpush1.bf16.msra.mxu0 %v1479
    %2275 = vmatprep.subr.bf16.mxu0 %v1484
    %2276 = vmatpush1.bf16.msra.mxu0 %v1483
    %2277 = vmatprep.subr.bf16.mxu0 %v1488
    %2278 = vmatpush1.bf16.msra.mxu0 %v1487
    %2279 = vmatprep.mubr.bf16.mxu0 %v224
    %2280 = vmatmul.mubr.bf16.gmra.mrb[0].mxu0 %v223
    %v2281 = vpop.f32.mrb[0].mxu0
    %v2282 = vadd.f32 %v2209, %v2281
    %v2283 = vpop.f32.mrb[0].mxu0
    %v2284 = vadd.f32 %v2211, %v2283
    %v2285 = vpop.f32.mrb[0].mxu0
    %v2286 = vadd.f32 %v2213, %v2285
    %v2287 = vpop.f32.mrb[0].mxu0
    %v2288 = vadd.f32 %v2215, %v2287
    %2289 = vmatprep.mubr.bf16.mxu0 %v232
    %2290 = vmatmul.mubr.bf16.gmra.mrb[0].mxu0 %v231
    %v2291 = vpop.f32.mrb[0].mxu0
    %v2292 = vadd.f32 %v2219, %v2291
    %v2293 = vpop.f32.mrb[0].mxu0
    %v2294 = vadd.f32 %v2221, %v2293
    %v2295 = vpop.f32.mrb[0].mxu0
    %v2296 = vadd.f32 %v2223, %v2295
    %v2297 = vpop.f32.mrb[0].mxu0
    %v2298 = vadd.f32 %v2225, %v2297
    %2299 = vmatprep.mubr.bf16.mxu0 %v240
    %2300 = vmatmul.mubr.bf16.gmra.mrb[0].mxu0 %v239
    %v2301 = vpop.f32.mrb[0].mxu0
    %v2302 = vadd.f32 %v2229, %v2301
    %v2303 = vpop.f32.mrb[0].mxu0
    %v2304 = vadd.f32 %v2231, %v2303
    %v2305 = vpop.f32.mrb[0].mxu0
    %v2306 = vadd.f32 %v2233, %v2305
    %v2307 = vpop.f32.mrb[0].mxu0
    %v2308 = vadd.f32 %v2235, %v2307
    %2309 = vmatprep.mubr.bf16.mxu0 %v248
    %2310 = vmatmul.mubr.bf16.gmra.mrb[0].mxu0 %v247
    %v2311 = vpop.f32.mrb[0].mxu0
    %v2312 = vadd.f32 %v2239, %v2311
    %v2313 = vpop.f32.mrb[0].mxu0
    %v2314 = vadd.f32 %v2241, %v2313
    %v2315 = vpop.f32.mrb[0].mxu0
    %v2316 = vadd.f32 %v2243, %v2315
    %v2317 = vpop.f32.mrb[0].mxu0
    %v2318 = vadd.f32 %v2245, %v2317
    %2319 = vdwg.mxu0
    %2320 = vmatprep.subr.bf16.mxu0 %v1492
    %2321 = vmatpush1.bf16.msra.mxu0 %v1491
    %2322 = vmatprep.subr.bf16.mxu0 %v1496
    %2323 = vmatpush1.bf16.msra.mxu0 %v1495
    %2324 = vmatprep.subr.bf16.mxu0 %v1500
    %2325 = vmatpush1.bf16.msra.mxu0 %v1499
    %2326 = vmatprep.subr.bf16.mxu0 %v1504
    %2327 = vmatpush1.bf16.msra.mxu0 %v1503
    %2328 = vmatprep.subr.bf16.mxu0 %v1508
    %2329 = vmatpush1.bf16.msra.mxu0 %v1507
    %2330 = vmatprep.subr.bf16.mxu0 %v1512
    %2331 = vmatpush1.bf16.msra.mxu0 %v1511
    %2332 = vmatprep.subr.bf16.mxu0 %v1516
    %2333 = vmatpush1.bf16.msra.mxu0 %v1515
    %2334 = vmatprep.subr.bf16.mxu0 %v1520
    %2335 = vmatpush1.bf16.msra.mxu0 %v1519
    %2336 = vmatprep.subr.bf16.mxu0 %v1524
    %2337 = vmatpush1.bf16.msra.mxu0 %v1523
    %2338 = vmatprep.subr.bf16.mxu0 %v1528
    %2339 = vmatpush1.bf16.msra.mxu0 %v1527
    %2340 = vmatprep.subr.bf16.mxu0 %v1532
    %2341 = vmatpush1.bf16.msra.mxu0 %v1531
    %2342 = vmatprep.subr.bf16.mxu0 %v1536
    %2343 = vmatpush1.bf16.msra.mxu0 %v1535
    %2344 = vmatprep.subr.bf16.mxu0 %v1540
    %2345 = vmatpush1.bf16.msra.mxu0 %v1539
    %2346 = vmatprep.subr.bf16.mxu0 %v1544
    %2347 = vmatpush1.bf16.msra.mxu0 %v1543
    %2348 = vmatprep.subr.bf16.mxu0 %v1548
    %2349 = vmatpush1.bf16.msra.mxu0 %v1547
    %2350 = vmatprep.subr.bf16.mxu0 %v1552
    %2351 = vmatpush1.bf16.msra.mxu0 %v1551
    %2352 = vmatprep.mubr.bf16.mxu0 %v226
    %2353 = vmatmul.mubr.bf16.gmra.mrb[0].mxu0 %v225
    %v2354 = vpop.f32.mrb[0].mxu0
    %v2355 = vadd.f32 %v2282, %v2354
    %v2356 = vpop.f32.mrb[0].mxu0
    %v2357 = vadd.f32 %v2284, %v2356
    %v2358 = vpop.f32.mrb[0].mxu0
    %v2359 = vadd.f32 %v2286, %v2358
    %v2360 = vpop.f32.mrb[0].mxu0
    %v2361 = vadd.f32 %v2288, %v2360
    %2362 = vmatprep.mubr.bf16.mxu0 %v234
    %2363 = vmatmul.mubr.bf16.gmra.mrb[0].mxu0 %v233
    %v2364 = vpop.f32.mrb[0].mxu0
    %v2365 = vadd.f32 %v2292, %v2364
    %v2366 = vpop.f32.mrb[0].mxu0
    %v2367 = vadd.f32 %v2294, %v2366
    %v2368 = vpop.f32.mrb[0].mxu0
    %v2369 = vadd.f32 %v2296, %v2368
    %v2370 = vpop.f32.mrb[0].mxu0
    %v2371 = vadd.f32 %v2298, %v2370
    %2372 = vmatprep.mubr.bf16.mxu0 %v242
    %2373 = vmatmul.mubr.bf16.gmra.mrb[0].mxu0 %v241
    %v2374 = vpop.f32.mrb[0].mxu0
    %v2375 = vadd.f32 %v2302, %v2374
    %v2376 = vpop.f32.mrb[0].mxu0
    %v2377 = vadd.f32 %v2304, %v2376
    %v2378 = vpop.f32.mrb[0].mxu0
    %v2379 = vadd.f32 %v2306, %v2378
    %v2380 = vpop.f32.mrb[0].mxu0
    %v2381 = vadd.f32 %v2308, %v2380
    %2382 = vmatprep.mubr.bf16.mxu0 %v250
    %2383 = vmatmul.mubr.bf16.gmra.mrb[0].mxu0 %v249
    %v2384 = vpop.f32.mrb[0].mxu0
    %v2385 = vadd.f32 %v2312, %v2384
    %v2386 = vpop.f32.mrb[0].mxu0
    %v2387 = vadd.f32 %v2314, %v2386
    %v2388 = vpop.f32.mrb[0].mxu0
    %v2389 = vadd.f32 %v2316, %v2388
    %v2390 = vpop.f32.mrb[0].mxu0
    %v2391 = vadd.f32 %v2318, %v2390
    %2392 = vdwg.mxu0
    %v2393 = vmax.f32 %v2063, 0.0
    %v2394 = vmax.f32 %v2065, 0.0
    %v2395 = vmax.f32 %v2355, 0.0
    %v2396 = vmax.f32 %v2357, 0.0
    %v2397 = vmax.f32 %v2067, 0.0
    %v2398 = vmax.f32 %v2069, 0.0
    %v2399 = vmax.f32 %v2359, 0.0
    %v2400 = vmax.f32 %v2361, 0.0
    %v2401 = vmax.f32 %v2073, 0.0
    %v2402 = vmax.f32 %v2075, 0.0
    %v2403 = vmax.f32 %v2365, 0.0
    %v2404 = vmax.f32 %v2367, 0.0
    %v2405 = vmax.f32 %v2077, 0.0
    %v2406 = vmax.f32 %v2079, 0.0
    %v2407 = vmax.f32 %v2369, 0.0
    %v2408 = vmax.f32 %v2371, 0.0
    %v2409 = vmax.f32 %v2083, 0.0
    %v2410 = vmax.f32 %v2085, 0.0
    %v2411 = vmax.f32 %v2375, 0.0
    %v2412 = vmax.f32 %v2377, 0.0
    %v2413 = vmax.f32 %v2087, 0.0
    %v2414 = vmax.f32 %v2089, 0.0
    %v2415 = vmax.f32 %v2379, 0.0
    %v2416 = vmax.f32 %v2381, 0.0
    %v2417 = vmax.f32 %v2093, 0.0
    %v2418 = vmax.f32 %v2095, 0.0
    %v2419 = vmax.f32 %v2385, 0.0
    %v2420 = vmax.f32 %v2387, 0.0
    %v2421 = vmax.f32 %v2097, 0.0
    %v2422 = vmax.f32 %v2099, 0.0
    %v2423 = vmax.f32 %v2389, 0.0
    %v2424 = vmax.f32 %v2391, 0.0
    %2425 = vst [vmem:[#allocation8] sm:$0xff] %v2393
    %2426 = vst [vmem:[#allocation8 + $0x8] sm:$0xff] %v2394
    %2427 = vst [vmem:[#allocation8 + $0x10] sm:$0xff] %v2395
    %2428 = vst [vmem:[#allocation8 + $0x18] sm:$0xff] %v2396
    %2429 = vst [vmem:[#allocation8 + $0x20] sm:$0xff] %v2397
    %2430 = vst [vmem:[#allocation8 + $0x28] sm:$0xff] %v2398
    %2431 = vst [vmem:[#allocation8 + $0x30] sm:$0xff] %v2399
    %2432 = vst [vmem:[#allocation8 + $0x38] sm:$0xff] %v2400
    %2433 = vst [vmem:[#allocation8 + $0x40] sm:$0xff] %v2401
    %2434 = vst [vmem:[#allocation8 + $0x48] sm:$0xff] %v2402
    %2435 = vst [vmem:[#allocation8 + $0x50] sm:$0xff] %v2403
    %2436 = vst [vmem:[#allocation8 + $0x58] sm:$0xff] %v2404
    %2437 = vst [vmem:[#allocation8 + $0x60] sm:$0xff] %v2405
    %2438 = vst [vmem:[#allocation8 + $0x68] sm:$0xff] %v2406
    %2439 = vst [vmem:[#allocation8 + $0x70] sm:$0xff] %v2407
    %2440 = vst [vmem:[#allocation8 + $0x78] sm:$0xff] %v2408
    %2441 = vst [vmem:[#allocation8 + $0x80] sm:$0xff] %v2409
    %2442 = vst [vmem:[#allocation8 + $0x88] sm:$0xff] %v2410
    %2443 = vst [vmem:[#allocation8 + $0x90] sm:$0xff] %v2411
    %2444 = vst [vmem:[#allocation8 + $0x98] sm:$0xff] %v2412
    %2445 = vst [vmem:[#allocation8 + $0xa0] sm:$0xff] %v2413
    %2446 = vst [vmem:[#allocation8 + $0xa8] sm:$0xff] %v2414
    %2447 = vst [vmem:[#allocation8 + $0xb0] sm:$0xff] %v2415
    %2448 = vst [vmem:[#allocation8 + $0xb8] sm:$0xff] %v2416
    %2449 = vst [vmem:[#allocation8 + $0xc0] sm:$0xff] %v2417
    %2450 = vst [vmem:[#allocation8 + $0xc8] sm:$0xff] %v2418
    %2451 = vst [vmem:[#allocation8 + $0xd0] sm:$0xff] %v2419
    %2452 = vst [vmem:[#allocation8 + $0xd8] sm:$0xff] %v2420
    %2453 = vst [vmem:[#allocation8 + $0xe0] sm:$0xff] %v2421
    %2454 = vst [vmem:[#allocation8 + $0xe8] sm:$0xff] %v2422
    %2455 = vst [vmem:[#allocation8 + $0xf0] sm:$0xff] %v2423
    %2456 = vst [vmem:[#allocation8 + $0xf8] sm:$0xff] %v2424
    // Predicated region
    $region30: #{tpu_custom_call.1} parent=1 // pred_check
      _
    $region31: #{tpu_custom_call.1} parent=1 // pred_check_branch
      %2458 = sbr.rel (0) target = $region33
    $region32: #{tpu_custom_call.1} parent=1 // pred_region
      %s2460 = ssub.s32 4096, 4096
      %2461 = vsyncadd [#allocation4], %s2460
      %s2462 = sshll.u32 [#allocation8], 4
      %s2463 = int_to_ptr.vmem [resolvable:$true] %s2462
      %2468 = dma.vmem_to_hbm [thread:$0]  %s2463, 4096, %s4, [#allocation4], 512, 512, 32
    $region33: #{tpu_custom_call.1} parent=1 // pred_fallthru
      _
    // Predicated region
    $region34: #{tpu_custom_call.1} parent=1 // pred_check
      _
    $region35: #{tpu_custom_call.1} parent=1 // pred_check_branch
      %2470 = sbr.rel (0) target = $region37
    $region36: #{tpu_custom_call.1} parent=1 // pred_region
      %2471 = dma.done [#allocation4], 4096
    $region37: #{tpu_custom_call.1} parent=1 // pred_fallthru
      _
    %2472 = vsyncpa [#allocation3], 1
    %2473 = vsyncpa [#allocation6], 1
    %2474 = vsyncpa [#allocation4], 1

</llo_original>
